<compile_context>
chip_gen: v7x
topology: tpu7x:2x2x1
jax: 0.10.0
libtpu: 0.0.40
codegen_flags: <defaults>
</compile_context>

<pallas_src>
import functools
import math

import jax
import jax.numpy as jnp
from jax.experimental import pallas as pl
from jax.experimental.pallas import tpu as pltpu

PHI = (1.0 + math.sqrt(5.0)) / 2.0


def _phi_attention_kernel(q_ref, k_ref, v_ref, cl_ref,
                          wq_ref, bq_ref, wk_ref, bk_ref, wv_ref, bv_ref,
                          wo_ref, bo_ref, wc_ref, bc_ref, phib_ref,
                          out_ref, attn_ref,
                          *, num_heads, seq_len):
    H, S = num_heads, seq_len
    N, E = q_ref.shape               # N = Bb * S rows in this batch block
    Bb = N // S
    Dh = E // H
    scale = 1.0 / (math.sqrt(Dh) * math.sqrt(PHI))
    bf16 = jnp.bfloat16

    # bf16 MXU operands (weights already arrive as bf16 from the wrapper).
    xq = q_ref[...].astype(bf16)
    xk = k_ref[...].astype(bf16)
    xv = v_ref[...].astype(bf16)

    # --- full-depth input projections (bf16 operands, f32 accumulation).
    #     The 1/(sqrt(Dh)*sqrt(phi)) score scale is folded into Q (incl. bias).
    Q = (jnp.dot(xq, wq_ref[...], preferred_element_type=jnp.float32)
         + bq_ref[...]) * scale
    K = jnp.dot(xk, wk_ref[...], preferred_element_type=jnp.float32) + bk_ref[...]
    V = jnp.dot(xv, wv_ref[...], preferred_element_type=jnp.float32) + bv_ref[...]

    # --- consciousness modulation, hoisted out of the per-head work:
    #     mod = 1 + level * softmax_heads(consciousness_proj(q)).
    cw_logits = (jnp.dot(xq, wc_ref[...], preferred_element_type=jnp.float32)
                 + bc_ref[...])                                              # (N, H)
    cw_e = jnp.exp(cw_logits - jnp.max(cw_logits, axis=-1, keepdims=True))
    cw = cw_e * pl.reciprocal(jnp.sum(cw_e, axis=-1, keepdims=True), approx=True)
    mod = 1.0 + cl_ref[...] * cw                                             # (N, H)

    # Head-major operands for the batched attention contractions, built once
    # per grid step (not per batch element).
    Qh = jnp.stack([Q[:, h * Dh:(h + 1) * Dh] for h in range(H)], axis=0).astype(bf16)
    Kh = jnp.stack([K[:, h * Dh:(h + 1) * Dh] for h in range(H)], axis=0).astype(bf16)
    Vh = jnp.stack([V[:, h * Dh:(h + 1) * Dh] for h in range(H)], axis=0).astype(bf16)
    modh = jnp.stack([mod[:, h:h + 1] for h in range(H)], axis=0)            # (H, N, 1)

    phib = phib_ref[...]                                                     # (H, 1, 1)
    wo = wo_ref[...]                                                         # (E, E) bf16
    bo = bo_ref[...]                                                         # (1, E) f32

    for b in range(Bb):                        # static; Bb is small (default 1)
        r0 = b * S
        Qb = Qh[:, r0:r0 + S, :]
        Kb = Kh[:, r0:r0 + S, :]
        Vb = Vh[:, r0:r0 + S, :]
        modb = modh[:, r0:r0 + S, :]

        # Head-batched QK^T + phi bias; softmax over keys (f32).
        scores = jnp.einsum("hqd,hkd->hqk", Qb, Kb,
                            preferred_element_type=jnp.float32) + phib       # (H,S,S)
        e1 = jnp.exp(scores - jnp.max(scores, axis=-1, keepdims=True))
        w1 = e1 * pl.reciprocal(jnp.sum(e1, axis=-1, keepdims=True), approx=True)

        # Consciousness re-weighting + second softmax.  w1*modb is bounded in
        # (0, 2] for consciousness levels in [0, 1], so the max-subtraction is
        # skipped (shift invariance; saves an (H,S,S) XLU reduce per element).
        e2 = jnp.exp(w1 * modb)
        w2 = e2 * pl.reciprocal(jnp.sum(e2, axis=-1, keepdims=True), approx=True)

        # Head-batched PV contraction.
        ctxh = jnp.einsum("hqk,hkd->hqd", w2.astype(bf16), Vb,
                          preferred_element_type=jnp.float32)                 # (H,S,Dh)

        # Lane-dense stores: ONE wide store per output per batch element
        # (no per-head masked vst.msk partial stores).
        attn_ref[r0:r0 + S, :] = jnp.concatenate([w2[h] for h in range(H)], axis=-1)
        ctx = jnp.concatenate([ctxh[h] for h in range(H)], axis=-1)           # (S, E)

        # Output projection on the in-register context (no scratch round trip).
        out_ref[r0:r0 + S, :] = (jnp.dot(ctx.astype(bf16), wo,
                                         preferred_element_type=jnp.float32) + bo)


def phi_harmonic_attention(query, key, value, consciousness_levels, params,
                           *, batch_block=None):
    """Batch-blocked grid; returns (output, attention_weights)."""
    B, S, E = query.shape
    H = params["wc"].shape[1]
    assert E % H == 0

    # grid >= 2 by default so the "parallel" batch axis can shard across
    # v7x's two TensorCores and per-step VMEM residency is halved.
    bb = batch_block if batch_block is not None else max(1, B // 2)
    assert B % bb == 0, "batch_block must divide batch size"
    n = bb * S
    assert n % 8 == 0 or n == B * S, \
        "rows per grid step must be a multiple of 8 (f32 sublane tile) or full B*S"

    bf16 = jnp.bfloat16
    q2 = query.reshape(B * S, E)
    k2 = key.reshape(B * S, E)
    v2 = value.reshape(B * S, E)
    cl2 = consciousness_levels.reshape(B * S, 1)
    phib3 = params["phi_bias"].reshape(H, 1, 1)
    wq = params["wq"].astype(bf16)
    wk = params["wk"].astype(bf16)
    wv = params["wv"].astype(bf16)
    wo = params["wo"].astype(bf16)
    wc = params["wc"].astype(bf16)

    row_spec = lambda width: pl.BlockSpec((n, width), lambda i: (i, 0))
    full = lambda shape: pl.BlockSpec(shape, lambda i: (0,) * len(shape))

    grid_spec = pltpu.PrefetchScalarGridSpec(
        num_scalar_prefetch=0,
        grid=(B // bb,),
        in_specs=[
            row_spec(E), row_spec(E), row_spec(E), row_spec(1),   # q, k, v, levels
            full((E, E)), full((1, E)),                           # wq, bq
            full((E, E)), full((1, E)),                           # wk, bk
            full((E, E)), full((1, E)),                           # wv, bv
            full((E, E)), full((1, E)),                           # wo, bo
            full((E, H)), full((1, H)),                           # wc, bc
            full((H, 1, 1)),                                      # phi_bias
        ],
        out_specs=(
            row_spec(E),          # output, (B*S, E)
            row_spec(H * S),      # attention weights, lane-packed (B*S, H*S)
        ),
    )

    # Per-step VMEM footprint (double-buffered row blocks + weights), with
    # generous margin; scoped-VMEM defaults (16/32 MiB) are far below physical.
    f32b, bf16b = 4, 2
    per_step = (2 * (3 * n * E + n) * f32b            # q, k, v, levels blocks
                + 2 * (n * E + n * H * S) * f32b      # out + attn blocks
                + 2 * (4 * E * E + E * H) * bf16b     # bf16 weights
                + 2 * (4 * E + 2 * H) * f32b)         # biases + phi_bias
    vmem_limit = int(min(64 * 1024 * 1024, max(32 * 1024 * 1024, 4 * per_step)))

    out2, attn_packed = pl.pallas_call(
        functools.partial(_phi_attention_kernel, num_heads=H, seq_len=S),
        out_shape=(jax.ShapeDtypeStruct((B * S, E), jnp.float32),
                   jax.ShapeDtypeStruct((B * S, H * S), jnp.float32)),
        grid_spec=grid_spec,
        compiler_params=pltpu.CompilerParams(
            dimension_semantics=("parallel",),
            vmem_limit_bytes=vmem_limit),
    )(q2, k2, v2, cl2,
      wq, params["bq"], wk, params["bk"], wv, params["bv"],
      wo, params["bo"], wc, params["bc"], phib3)

    out = out2.reshape(B, S, E)
    # TODO(synk): for S >= 128 emit (B,H,S,S) directly from the kernel and drop
    #             this HBM->HBM unpack (reshape + transpose) of the largest output.
    attn = attn_packed.reshape(B, S, H, S).transpose(0, 2, 1, 3)
    return out, attn


def make_params(key, embed_dim, num_heads):
    """Deterministic parameter init mirroring the module's __init__ shapes."""
    E, H = embed_dim, num_heads
    ks = jax.random.split(key, 5)
    # xavier_uniform with gain = 1/phi for q/k/v/out projections
    bound = (1.0 / PHI) * math.sqrt(6.0 / (E + E))
    uni = lambda k, shape, b: jax.random.uniform(k, shape, jnp.float32, -b, b)
    return {
        "wq": uni(ks[0], (E, E), bound), "bq": jnp.zeros((1, E), jnp.float32),
        "wk": uni(ks[1], (E, E), bound), "bk": jnp.zeros((1, E), jnp.float32),
        "wv": uni(ks[2], (E, E), bound), "bv": jnp.zeros((1, E), jnp.float32),
        "wo": uni(ks[3], (E, E), bound), "bo": jnp.zeros((1, E), jnp.float32),
        # consciousness_proj: default-style uniform init
        "wc": uni(ks[4], (E, H), 1.0 / math.sqrt(E)),
        "bc": jnp.zeros((1, H), jnp.float32),
        # phi_bias[head] = (head+1)/phi^(head+1)
        "phi_bias": jnp.array([(h + 1) / PHI ** (h + 1) for h in range(H)],
                              dtype=jnp.float32),
    }


def reference(query, key, value, consciousness_levels, params, num_heads):
    """Pure-JAX f32 reference replicating the PyTorch forward semantics."""
    B, S, E = query.shape
    H = num_heads
    Dh = E // H
    Q = (query @ params["wq"] + params["bq"]).reshape(B, S, H, Dh).transpose(0, 2, 1, 3)
    K = (key @ params["wk"] + params["bk"]).reshape(B, S, H, Dh).transpose(0, 2, 1, 3)
    V = (value @ params["wv"] + params["bv"]).reshape(B, S, H, Dh).transpose(0, 2, 1, 3)
    scores = jnp.einsum("bhqd,bhkd->bhqk", Q, K) / (math.sqrt(Dh) * math.sqrt(PHI))
    scores = scores + params["phi_bias"].reshape(1, H, 1, 1)
    w = jax.nn.softmax(scores, axis=-1)
    cw = jax.nn.softmax(query @ params["wc"] + params["bc"], axis=-1)        # (B,S,H)
    cw = cw.transpose(0, 2, 1)[..., None]                                    # (B,H,S,1)
    cb = consciousness_levels[:, None, :, None]                              # (B,1,S,1)
    w = w * (1.0 + cb * cw)
    w = jax.nn.softmax(w, axis=-1)
    ctx = jnp.einsum("bhqk,bhkd->bhqd", w, V).transpose(0, 2, 1, 3).reshape(B, S, E)
    out = ctx @ params["wo"] + params["bo"]
    return out, w


if __name__ == "__main__":
    B, S, E, H = 2, 8, 32, 8

    root = jax.random.PRNGKey(0)
    k_q, k_k, k_v, k_c, k_p = jax.random.split(root, 5)

    query = jax.random.normal(k_q, (B, S, E), jnp.float32)
    key_t = jax.random.normal(k_k, (B, S, E), jnp.float32)
    value = jax.random.normal(k_v, (B, S, E), jnp.float32)
    consciousness_levels = jax.random.uniform(k_c, (B, S), jnp.float32)

    params = make_params(k_p, E, H)

    out, attn = phi_harmonic_attention(query, key_t, value, consciousness_levels, params)
    jax.block_until_ready((out, attn))

    ref_out, ref_attn = reference(query, key_t, value, consciousness_levels, params, H)
    assert out.shape == (B, S, E) and attn.shape == (B, H, S, S)
    # Tolerance 2e-2: MXU operands are bf16 (f32 accumulation) and the softmax
    # denominators use the EUP approximate reciprocal; the f32 reference is exact.
    assert jnp.allclose(out, ref_out, atol=2e-2, rtol=2e-2), \
        float(jnp.max(jnp.abs(out - ref_out)))
    assert jnp.allclose(attn, ref_attn, atol=2e-2, rtol=2e-2), \
        float(jnp.max(jnp.abs(attn - ref_attn)))

    print("KERNEL_OK")
</pallas_src>

<mosaic_0001>
module attributes {stable_mosaic.version = 11 : i64} {
  func.func @_phi_attention_kernel(%arg0: i32, %arg1: memref<8x32xf32, #tpu.memory_space<vmem>>, %arg2: memref<8x32xf32, #tpu.memory_space<vmem>>, %arg3: memref<8x32xf32, #tpu.memory_space<vmem>>, %arg4: memref<8x1xf32, #tpu.memory_space<vmem>>, %arg5: memref<32x32xbf16, #tpu.memory_space<vmem>>, %arg6: memref<1x32xf32, #tpu.memory_space<vmem>>, %arg7: memref<32x32xbf16, #tpu.memory_space<vmem>>, %arg8: memref<1x32xf32, #tpu.memory_space<vmem>>, %arg9: memref<32x32xbf16, #tpu.memory_space<vmem>>, %arg10: memref<1x32xf32, #tpu.memory_space<vmem>>, %arg11: memref<32x32xbf16, #tpu.memory_space<vmem>>, %arg12: memref<1x32xf32, #tpu.memory_space<vmem>>, %arg13: memref<32x8xbf16, #tpu.memory_space<vmem>>, %arg14: memref<1x8xf32, #tpu.memory_space<vmem>>, %arg15: memref<8x1x1xf32, #tpu.memory_space<vmem>>, %arg16: memref<8x32xf32, #tpu.memory_space<vmem>>, %arg17: memref<8x64xf32, #tpu.memory_space<vmem>>) attributes {dimension_semantics = [#tpu.dimension_semantics<parallel>], iteration_bounds = array<i64: 2>, scalar_prefetch = 0 : i64, scratch_operands = 0 : i64, tpu.core_type = #tpu.core_type<tc>, window_params = [{transform_indices = @transform_0, window_bounds = array<i64: 8, 32>}, {transform_indices = @transform_1, window_bounds = array<i64: 8, 32>}, {transform_indices = @transform_2, window_bounds = array<i64: 8, 32>}, {transform_indices = @transform_3, window_bounds = array<i64: 8, 1>}, {pipeline_mode = #tpu.pipeline_mode<synchronous>, transform_indices = @transform_4, window_bounds = array<i64: 32, 32>}, {pipeline_mode = #tpu.pipeline_mode<synchronous>, transform_indices = @transform_5, window_bounds = array<i64: 1, 32>}, {pipeline_mode = #tpu.pipeline_mode<synchronous>, transform_indices = @transform_6, window_bounds = array<i64: 32, 32>}, {pipeline_mode = #tpu.pipeline_mode<synchronous>, transform_indices = @transform_7, window_bounds = array<i64: 1, 32>}, {pipeline_mode = #tpu.pipeline_mode<synchronous>, transform_indices = @transform_8, window_bounds = array<i64: 32, 32>}, {pipeline_mode = #tpu.pipeline_mode<synchronous>, transform_indices = @transform_9, window_bounds = array<i64: 1, 32>}, {pipeline_mode = #tpu.pipeline_mode<synchronous>, transform_indices = @transform_10, window_bounds = array<i64: 32, 32>}, {pipeline_mode = #tpu.pipeline_mode<synchronous>, transform_indices = @transform_11, window_bounds = array<i64: 1, 32>}, {pipeline_mode = #tpu.pipeline_mode<synchronous>, transform_indices = @transform_12, window_bounds = array<i64: 32, 8>}, {pipeline_mode = #tpu.pipeline_mode<synchronous>, transform_indices = @transform_13, window_bounds = array<i64: 1, 8>}, {pipeline_mode = #tpu.pipeline_mode<synchronous>, transform_indices = @transform_14, window_bounds = array<i64: 8, 1, 1>}, {transform_indices = @transform_15, window_bounds = array<i64: 8, 32>}, {transform_indices = @transform_16, window_bounds = array<i64: 8, 64>}]} {
    %c0 = arith.constant 0 : index
    %c0_0 = arith.constant 0 : index
    %0 = vector.load %arg1[%c0, %c0_0] : memref<8x32xf32, #tpu.memory_space<vmem>>, vector<8x32xf32>
    %1 = arith.truncf %0 : vector<8x32xf32> to vector<8x32xbf16>
    %c0_1 = arith.constant 0 : index
    %c0_2 = arith.constant 0 : index
    %2 = vector.load %arg2[%c0_1, %c0_2] : memref<8x32xf32, #tpu.memory_space<vmem>>, vector<8x32xf32>
    %3 = arith.truncf %2 : vector<8x32xf32> to vector<8x32xbf16>
    %c0_3 = arith.constant 0 : index
    %c0_4 = arith.constant 0 : index
    %4 = vector.load %arg3[%c0_3, %c0_4] : memref<8x32xf32, #tpu.memory_space<vmem>>, vector<8x32xf32>
    %5 = arith.truncf %4 : vector<8x32xf32> to vector<8x32xbf16>
    %c0_5 = arith.constant 0 : index
    %c0_6 = arith.constant 0 : index
    %6 = vector.load %arg5[%c0_5, %c0_6] : memref<32x32xbf16, #tpu.memory_space<vmem>>, vector<32x32xbf16>
    %cst = arith.constant dense<0.000000e+00> : vector<8x32xf32>
    %7 = tpu.matmul %1, %6, %cst {dimension_numbers = #tpu.dot_dimension_numbers<[1], [0], [0], [1], [0, 0, 1, 1], [], []>} : vector<8x32xbf16>, vector<32x32xbf16>, vector<8x32xf32> -> vector<8x32xf32>
    %c0_7 = arith.constant 0 : index
    %c0_8 = arith.constant 0 : index
    %8 = vector.load %arg6[%c0_7, %c0_8] : memref<1x32xf32, #tpu.memory_space<vmem>>, vector<1x32xf32>
    %9 = vector.broadcast %8 : vector<1x32xf32> to vector<8x32xf32>
    %10 = arith.addf %7, %9 : vector<8x32xf32>
    %cst_9 = arith.constant 0.393075675 : f32
    %11 = vector.broadcast %cst_9 : f32 to vector<8x32xf32>
    %12 = arith.mulf %10, %11 : vector<8x32xf32>
    %c0_10 = arith.constant 0 : index
    %c0_11 = arith.constant 0 : index
    %13 = vector.load %arg7[%c0_10, %c0_11] : memref<32x32xbf16, #tpu.memory_space<vmem>>, vector<32x32xbf16>
    %cst_12 = arith.constant dense<0.000000e+00> : vector<8x32xf32>
    %14 = tpu.matmul %3, %13, %cst_12 {dimension_numbers = #tpu.dot_dimension_numbers<[1], [0], [0], [1], [0, 0, 1, 1], [], []>} : vector<8x32xbf16>, vector<32x32xbf16>, vector<8x32xf32> -> vector<8x32xf32>
    %c0_13 = arith.constant 0 : index
    %c0_14 = arith.constant 0 : index
    %15 = vector.load %arg8[%c0_13, %c0_14] : memref<1x32xf32, #tpu.memory_space<vmem>>, vector<1x32xf32>
    %16 = vector.broadcast %15 : vector<1x32xf32> to vector<8x32xf32>
    %17 = arith.addf %14, %16 : vector<8x32xf32>
    %c0_15 = arith.constant 0 : index
    %c0_16 = arith.constant 0 : index
    %18 = vector.load %arg9[%c0_15, %c0_16] : memref<32x32xbf16, #tpu.memory_space<vmem>>, vector<32x32xbf16>
    %cst_17 = arith.constant dense<0.000000e+00> : vector<8x32xf32>
    %19 = tpu.matmul %5, %18, %cst_17 {dimension_numbers = #tpu.dot_dimension_numbers<[1], [0], [0], [1], [0, 0, 1, 1], [], []>} : vector<8x32xbf16>, vector<32x32xbf16>, vector<8x32xf32> -> vector<8x32xf32>
    %c0_18 = arith.constant 0 : index
    %c0_19 = arith.constant 0 : index
    %20 = vector.load %arg10[%c0_18, %c0_19] : memref<1x32xf32, #tpu.memory_space<vmem>>, vector<1x32xf32>
    %21 = vector.broadcast %20 : vector<1x32xf32> to vector<8x32xf32>
    %22 = arith.addf %19, %21 : vector<8x32xf32>
    %c0_20 = arith.constant 0 : index
    %c0_21 = arith.constant 0 : index
    %23 = vector.load %arg13[%c0_20, %c0_21] : memref<32x8xbf16, #tpu.memory_space<vmem>>, vector<32x8xbf16>
    %cst_22 = arith.constant dense<0.000000e+00> : vector<8x8xf32>
    %24 = tpu.matmul %1, %23, %cst_22 {dimension_numbers = #tpu.dot_dimension_numbers<[1], [0], [0], [1], [0, 0, 1, 1], [], []>} : vector<8x32xbf16>, vector<32x8xbf16>, vector<8x8xf32> -> vector<8x8xf32>
    %c0_23 = arith.constant 0 : index
    %c0_24 = arith.constant 0 : index
    %25 = vector.load %arg14[%c0_23, %c0_24] : memref<1x8xf32, #tpu.memory_space<vmem>>, vector<1x8xf32>
    %26 = vector.broadcast %25 : vector<1x8xf32> to vector<8x8xf32>
    %27 = arith.addf %24, %26 : vector<8x8xf32>
    %cst_25 = arith.constant dense<0xFF800000> : vector<8xf32>
    %28 = vector.multi_reduction <maximumf>, %27, %cst_25 [1] : vector<8x8xf32> to vector<8xf32>
    %29 = vector.shape_cast %28 : vector<8xf32> to vector<8x1xf32>
    %30 = vector.broadcast %29 : vector<8x1xf32> to vector<8x8xf32>
    %31 = arith.subf %27, %30 : vector<8x8xf32>
    %32 = math.exp %31 : vector<8x8xf32>
    %cst_26 = arith.constant dense<0.000000e+00> : vector<8xf32>
    %33 = vector.multi_reduction <add>, %32, %cst_26 [1] : vector<8x8xf32> to vector<8xf32>
    %34 = vector.shape_cast %33 : vector<8xf32> to vector<8x1xf32>
    %35 = tpu.reciprocal %34 {approx = true} : vector<8x1xf32> -> vector<8x1xf32>
    %36 = vector.broadcast %35 : vector<8x1xf32> to vector<8x8xf32>
    %37 = arith.mulf %32, %36 : vector<8x8xf32>
    %c0_27 = arith.constant 0 : index
    %c0_28 = arith.constant 0 : index
    %38 = vector.load %arg4[%c0_27, %c0_28] : memref<8x1xf32, #tpu.memory_space<vmem>>, vector<8x1xf32>
    %39 = vector.broadcast %38 : vector<8x1xf32> to vector<8x8xf32>
    %40 = arith.mulf %39, %37 : vector<8x8xf32>
    %cst_29 = arith.constant 1.000000e+00 : f32
    %41 = vector.broadcast %cst_29 : f32 to vector<8x8xf32>
    %42 = arith.addf %41, %40 : vector<8x8xf32>
    %43 = vector.extract_strided_slice %12 {offsets = [0, 0], sizes = [8, 4], strides = [1, 1]} : vector<8x32xf32> to vector<8x4xf32>
    %44 = vector.extract_strided_slice %12 {offsets = [0, 4], sizes = [8, 4], strides = [1, 1]} : vector<8x32xf32> to vector<8x4xf32>
    %45 = vector.extract_strided_slice %12 {offsets = [0, 8], sizes = [8, 4], strides = [1, 1]} : vector<8x32xf32> to vector<8x4xf32>
    %46 = vector.extract_strided_slice %12 {offsets = [0, 12], sizes = [8, 4], strides = [1, 1]} : vector<8x32xf32> to vector<8x4xf32>
    %47 = vector.extract_strided_slice %12 {offsets = [0, 16], sizes = [8, 4], strides = [1, 1]} : vector<8x32xf32> to vector<8x4xf32>
    %48 = vector.extract_strided_slice %12 {offsets = [0, 20], sizes = [8, 4], strides = [1, 1]} : vector<8x32xf32> to vector<8x4xf32>
    %49 = vector.extract_strided_slice %12 {offsets = [0, 24], sizes = [8, 4], strides = [1, 1]} : vector<8x32xf32> to vector<8x4xf32>
    %50 = vector.extract_strided_slice %12 {offsets = [0, 28], sizes = [8, 4], strides = [1, 1]} : vector<8x32xf32> to vector<8x4xf32>
    %51 = vector.shape_cast %43 : vector<8x4xf32> to vector<1x8x4xf32>
    %52 = vector.shape_cast %44 : vector<8x4xf32> to vector<1x8x4xf32>
    %53 = vector.shape_cast %45 : vector<8x4xf32> to vector<1x8x4xf32>
    %54 = vector.shape_cast %46 : vector<8x4xf32> to vector<1x8x4xf32>
    %55 = vector.shape_cast %47 : vector<8x4xf32> to vector<1x8x4xf32>
    %56 = vector.shape_cast %48 : vector<8x4xf32> to vector<1x8x4xf32>
    %57 = vector.shape_cast %49 : vector<8x4xf32> to vector<1x8x4xf32>
    %58 = vector.shape_cast %50 : vector<8x4xf32> to vector<1x8x4xf32>
    %59 = tpu.concatenate %51, %52, %53, %54, %55, %56, %57, %58 in 0 : vector<1x8x4xf32>, vector<1x8x4xf32>, vector<1x8x4xf32>, vector<1x8x4xf32>, vector<1x8x4xf32>, vector<1x8x4xf32>, vector<1x8x4xf32>, vector<1x8x4xf32> -> vector<8x8x4xf32>
    %60 = arith.truncf %59 : vector<8x8x4xf32> to vector<8x8x4xbf16>
    %61 = vector.extract_strided_slice %17 {offsets = [0, 0], sizes = [8, 4], strides = [1, 1]} : vector<8x32xf32> to vector<8x4xf32>
    %62 = vector.extract_strided_slice %17 {offsets = [0, 4], sizes = [8, 4], strides = [1, 1]} : vector<8x32xf32> to vector<8x4xf32>
    %63 = vector.extract_strided_slice %17 {offsets = [0, 8], sizes = [8, 4], strides = [1, 1]} : vector<8x32xf32> to vector<8x4xf32>
    %64 = vector.extract_strided_slice %17 {offsets = [0, 12], sizes = [8, 4], strides = [1, 1]} : vector<8x32xf32> to vector<8x4xf32>
    %65 = vector.extract_strided_slice %17 {offsets = [0, 16], sizes = [8, 4], strides = [1, 1]} : vector<8x32xf32> to vector<8x4xf32>
    %66 = vector.extract_strided_slice %17 {offsets = [0, 20], sizes = [8, 4], strides = [1, 1]} : vector<8x32xf32> to vector<8x4xf32>
    %67 = vector.extract_strided_slice %17 {offsets = [0, 24], sizes = [8, 4], strides = [1, 1]} : vector<8x32xf32> to vector<8x4xf32>
    %68 = vector.extract_strided_slice %17 {offsets = [0, 28], sizes = [8, 4], strides = [1, 1]} : vector<8x32xf32> to vector<8x4xf32>
    %69 = vector.shape_cast %61 : vector<8x4xf32> to vector<1x8x4xf32>
    %70 = vector.shape_cast %62 : vector<8x4xf32> to vector<1x8x4xf32>
    %71 = vector.shape_cast %63 : vector<8x4xf32> to vector<1x8x4xf32>
    %72 = vector.shape_cast %64 : vector<8x4xf32> to vector<1x8x4xf32>
    %73 = vector.shape_cast %65 : vector<8x4xf32> to vector<1x8x4xf32>
    %74 = vector.shape_cast %66 : vector<8x4xf32> to vector<1x8x4xf32>
    %75 = vector.shape_cast %67 : vector<8x4xf32> to vector<1x8x4xf32>
    %76 = vector.shape_cast %68 : vector<8x4xf32> to vector<1x8x4xf32>
    %77 = tpu.concatenate %69, %70, %71, %72, %73, %74, %75, %76 in 0 : vector<1x8x4xf32>, vector<1x8x4xf32>, vector<1x8x4xf32>, vector<1x8x4xf32>, vector<1x8x4xf32>, vector<1x8x4xf32>, vector<1x8x4xf32>, vector<1x8x4xf32> -> vector<8x8x4xf32>
    %78 = arith.truncf %77 : vector<8x8x4xf32> to vector<8x8x4xbf16>
    %79 = vector.extract_strided_slice %22 {offsets = [0, 0], sizes = [8, 4], strides = [1, 1]} : vector<8x32xf32> to vector<8x4xf32>
    %80 = vector.extract_strided_slice %22 {offsets = [0, 4], sizes = [8, 4], strides = [1, 1]} : vector<8x32xf32> to vector<8x4xf32>
    %81 = vector.extract_strided_slice %22 {offsets = [0, 8], sizes = [8, 4], strides = [1, 1]} : vector<8x32xf32> to vector<8x4xf32>
    %82 = vector.extract_strided_slice %22 {offsets = [0, 12], sizes = [8, 4], strides = [1, 1]} : vector<8x32xf32> to vector<8x4xf32>
    %83 = vector.extract_strided_slice %22 {offsets = [0, 16], sizes = [8, 4], strides = [1, 1]} : vector<8x32xf32> to vector<8x4xf32>
    %84 = vector.extract_strided_slice %22 {offsets = [0, 20], sizes = [8, 4], strides = [1, 1]} : vector<8x32xf32> to vector<8x4xf32>
    %85 = vector.extract_strided_slice %22 {offsets = [0, 24], sizes = [8, 4], strides = [1, 1]} : vector<8x32xf32> to vector<8x4xf32>
    %86 = vector.extract_strided_slice %22 {offsets = [0, 28], sizes = [8, 4], strides = [1, 1]} : vector<8x32xf32> to vector<8x4xf32>
    %87 = vector.shape_cast %79 : vector<8x4xf32> to vector<1x8x4xf32>
    %88 = vector.shape_cast %80 : vector<8x4xf32> to vector<1x8x4xf32>
    %89 = vector.shape_cast %81 : vector<8x4xf32> to vector<1x8x4xf32>
    %90 = vector.shape_cast %82 : vector<8x4xf32> to vector<1x8x4xf32>
    %91 = vector.shape_cast %83 : vector<8x4xf32> to vector<1x8x4xf32>
    %92 = vector.shape_cast %84 : vector<8x4xf32> to vector<1x8x4xf32>
    %93 = vector.shape_cast %85 : vector<8x4xf32> to vector<1x8x4xf32>
    %94 = vector.shape_cast %86 : vector<8x4xf32> to vector<1x8x4xf32>
    %95 = tpu.concatenate %87, %88, %89, %90, %91, %92, %93, %94 in 0 : vector<1x8x4xf32>, vector<1x8x4xf32>, vector<1x8x4xf32>, vector<1x8x4xf32>, vector<1x8x4xf32>, vector<1x8x4xf32>, vector<1x8x4xf32>, vector<1x8x4xf32> -> vector<8x8x4xf32>
    %96 = arith.truncf %95 : vector<8x8x4xf32> to vector<8x8x4xbf16>
    %97 = vector.extract_strided_slice %42 {offsets = [0, 0], sizes = [8, 1], strides = [1, 1]} : vector<8x8xf32> to vector<8x1xf32>
    %98 = vector.extract_strided_slice %42 {offsets = [0, 1], sizes = [8, 1], strides = [1, 1]} : vector<8x8xf32> to vector<8x1xf32>
    %99 = vector.extract_strided_slice %42 {offsets = [0, 2], sizes = [8, 1], strides = [1, 1]} : vector<8x8xf32> to vector<8x1xf32>
    %100 = vector.extract_strided_slice %42 {offsets = [0, 3], sizes = [8, 1], strides = [1, 1]} : vector<8x8xf32> to vector<8x1xf32>
    %101 = vector.extract_strided_slice %42 {offsets = [0, 4], sizes = [8, 1], strides = [1, 1]} : vector<8x8xf32> to vector<8x1xf32>
    %102 = vector.extract_strided_slice %42 {offsets = [0, 5], sizes = [8, 1], strides = [1, 1]} : vector<8x8xf32> to vector<8x1xf32>
    %103 = vector.extract_strided_slice %42 {offsets = [0, 6], sizes = [8, 1], strides = [1, 1]} : vector<8x8xf32> to vector<8x1xf32>
    %104 = vector.extract_strided_slice %42 {offsets = [0, 7], sizes = [8, 1], strides = [1, 1]} : vector<8x8xf32> to vector<8x1xf32>
    %105 = vector.shape_cast %97 : vector<8x1xf32> to vector<1x8x1xf32>
    %106 = vector.shape_cast %98 : vector<8x1xf32> to vector<1x8x1xf32>
    %107 = vector.shape_cast %99 : vector<8x1xf32> to vector<1x8x1xf32>
    %108 = vector.shape_cast %100 : vector<8x1xf32> to vector<1x8x1xf32>
    %109 = vector.shape_cast %101 : vector<8x1xf32> to vector<1x8x1xf32>
    %110 = vector.shape_cast %102 : vector<8x1xf32> to vector<1x8x1xf32>
    %111 = vector.shape_cast %103 : vector<8x1xf32> to vector<1x8x1xf32>
    %112 = vector.shape_cast %104 : vector<8x1xf32> to vector<1x8x1xf32>
    %113 = tpu.concatenate %105, %106, %107, %108, %109, %110, %111, %112 in 0 : vector<1x8x1xf32>, vector<1x8x1xf32>, vector<1x8x1xf32>, vector<1x8x1xf32>, vector<1x8x1xf32>, vector<1x8x1xf32>, vector<1x8x1xf32>, vector<1x8x1xf32> -> vector<8x8x1xf32>
    %c0_30 = arith.constant 0 : index
    %c0_31 = arith.constant 0 : index
    %c0_32 = arith.constant 0 : index
    %114 = vector.load %arg15[%c0_30, %c0_31, %c0_32] : memref<8x1x1xf32, #tpu.memory_space<vmem>>, vector<8x1x1xf32>
    %c0_33 = arith.constant 0 : index
    %c0_34 = arith.constant 0 : index
    %115 = vector.load %arg11[%c0_33, %c0_34] : memref<32x32xbf16, #tpu.memory_space<vmem>>, vector<32x32xbf16>
    %c0_35 = arith.constant 0 : index
    %c0_36 = arith.constant 0 : index
    %116 = vector.load %arg12[%c0_35, %c0_36] : memref<1x32xf32, #tpu.memory_space<vmem>>, vector<1x32xf32>
    "tpu.trace_start"() <{level = 10 : i32, message = "hqd,hkd->hqk"}> : () -> ()
    %cst_37 = arith.constant dense<0.000000e+00> : vector<8x8x8xf32>
    %117 = tpu.matmul %60, %78, %cst_37 {dimension_numbers = #tpu.dot_dimension_numbers<[2], [2], [1], [1], [0, 0, 0, 1, 1, 1], [0], [0]>} : vector<8x8x4xbf16>, vector<8x8x4xbf16>, vector<8x8x8xf32> -> vector<8x8x8xf32>
    "tpu.trace_stop"() : () -> ()
    %118 = vector.broadcast %114 : vector<8x1x1xf32> to vector<8x8x8xf32>
    %119 = arith.addf %117, %118 : vector<8x8x8xf32>
    %cst_38 = arith.constant dense<0xFF800000> : vector<8x8xf32>
    %120 = vector.multi_reduction <maximumf>, %119, %cst_38 [2] : vector<8x8x8xf32> to vector<8x8xf32>
    %121 = vector.shape_cast %120 : vector<8x8xf32> to vector<8x8x1xf32>
    %122 = vector.broadcast %121 : vector<8x8x1xf32> to vector<8x8x8xf32>
    %123 = arith.subf %119, %122 : vector<8x8x8xf32>
    %124 = math.exp %123 : vector<8x8x8xf32>
    %cst_39 = arith.constant dense<0.000000e+00> : vector<8x8xf32>
    %125 = vector.multi_reduction <add>, %124, %cst_39 [2] : vector<8x8x8xf32> to vector<8x8xf32>
    %126 = vector.shape_cast %125 : vector<8x8xf32> to vector<8x8x1xf32>
    %127 = tpu.reciprocal %126 {approx = true} : vector<8x8x1xf32> -> vector<8x8x1xf32>
    %128 = vector.broadcast %127 : vector<8x8x1xf32> to vector<8x8x8xf32>
    %129 = arith.mulf %124, %128 : vector<8x8x8xf32>
    %130 = vector.broadcast %113 : vector<8x8x1xf32> to vector<8x8x8xf32>
    %131 = arith.mulf %129, %130 : vector<8x8x8xf32>
    %132 = math.exp %131 : vector<8x8x8xf32>
    %cst_40 = arith.constant dense<0.000000e+00> : vector<8x8xf32>
    %133 = vector.multi_reduction <add>, %132, %cst_40 [2] : vector<8x8x8xf32> to vector<8x8xf32>
    %134 = vector.shape_cast %133 : vector<8x8xf32> to vector<8x8x1xf32>
    %135 = tpu.reciprocal %134 {approx = true} : vector<8x8x1xf32> -> vector<8x8x1xf32>
    %136 = vector.broadcast %135 : vector<8x8x1xf32> to vector<8x8x8xf32>
    %137 = arith.mulf %132, %136 : vector<8x8x8xf32>
    %138 = arith.truncf %137 : vector<8x8x8xf32> to vector<8x8x8xbf16>
    "tpu.trace_start"() <{level = 10 : i32, message = "hqk,hkd->hqd"}> : () -> ()
    %cst_41 = arith.constant dense<0.000000e+00> : vector<8x8x4xf32>
    %139 = tpu.matmul %138, %96, %cst_41 {dimension_numbers = #tpu.dot_dimension_numbers<[2], [1], [1], [2], [0, 0, 0, 1, 1, 2], [0], [0]>} : vector<8x8x8xbf16>, vector<8x8x4xbf16>, vector<8x8x4xf32> -> vector<8x8x4xf32>
    "tpu.trace_stop"() : () -> ()
    %140 = vector.extract_strided_slice %137 {offsets = [0, 0, 0], sizes = [1, 8, 8], strides = [1, 1, 1]} : vector<8x8x8xf32> to vector<1x8x8xf32>
    %141 = vector.shape_cast %140 : vector<1x8x8xf32> to vector<8x8xf32>
    %142 = vector.extract_strided_slice %137 {offsets = [1, 0, 0], sizes = [1, 8, 8], strides = [1, 1, 1]} : vector<8x8x8xf32> to vector<1x8x8xf32>
    %143 = vector.shape_cast %142 : vector<1x8x8xf32> to vector<8x8xf32>
    %144 = vector.extract_strided_slice %137 {offsets = [2, 0, 0], sizes = [1, 8, 8], strides = [1, 1, 1]} : vector<8x8x8xf32> to vector<1x8x8xf32>
    %145 = vector.shape_cast %144 : vector<1x8x8xf32> to vector<8x8xf32>
    %146 = vector.extract_strided_slice %137 {offsets = [3, 0, 0], sizes = [1, 8, 8], strides = [1, 1, 1]} : vector<8x8x8xf32> to vector<1x8x8xf32>
    %147 = vector.shape_cast %146 : vector<1x8x8xf32> to vector<8x8xf32>
    %148 = vector.extract_strided_slice %137 {offsets = [4, 0, 0], sizes = [1, 8, 8], strides = [1, 1, 1]} : vector<8x8x8xf32> to vector<1x8x8xf32>
    %149 = vector.shape_cast %148 : vector<1x8x8xf32> to vector<8x8xf32>
    %150 = vector.extract_strided_slice %137 {offsets = [5, 0, 0], sizes = [1, 8, 8], strides = [1, 1, 1]} : vector<8x8x8xf32> to vector<1x8x8xf32>
    %151 = vector.shape_cast %150 : vector<1x8x8xf32> to vector<8x8xf32>
    %152 = vector.extract_strided_slice %137 {offsets = [6, 0, 0], sizes = [1, 8, 8], strides = [1, 1, 1]} : vector<8x8x8xf32> to vector<1x8x8xf32>
    %153 = vector.shape_cast %152 : vector<1x8x8xf32> to vector<8x8xf32>
    %154 = vector.extract_strided_slice %137 {offsets = [7, 0, 0], sizes = [1, 8, 8], strides = [1, 1, 1]} : vector<8x8x8xf32> to vector<1x8x8xf32>
    %155 = vector.shape_cast %154 : vector<1x8x8xf32> to vector<8x8xf32>
    %156 = tpu.concatenate %141, %143, %145, %147, %149, %151, %153, %155 in 1 : vector<8x8xf32>, vector<8x8xf32>, vector<8x8xf32>, vector<8x8xf32>, vector<8x8xf32>, vector<8x8xf32>, vector<8x8xf32>, vector<8x8xf32> -> vector<8x64xf32>
    %c0_42 = arith.constant 0 : index
    %c0_43 = arith.constant 0 : index
    %157 = vector.load %arg17[%c0_42, %c0_43] : memref<8x64xf32, #tpu.memory_space<vmem>>, vector<8x64xf32>
    tpu.vector_store %arg17[%c0_42, %c0_43], %156 {strides = array<i32>} : memref<8x64xf32, #tpu.memory_space<vmem>>, vector<8x64xf32>,
    %158 = vector.extract_strided_slice %139 {offsets = [0, 0, 0], sizes = [1, 8, 4], strides = [1, 1, 1]} : vector<8x8x4xf32> to vector<1x8x4xf32>
    %159 = vector.shape_cast %158 : vector<1x8x4xf32> to vector<8x4xf32>
    %160 = vector.extract_strided_slice %139 {offsets = [1, 0, 0], sizes = [1, 8, 4], strides = [1, 1, 1]} : vector<8x8x4xf32> to vector<1x8x4xf32>
    %161 = vector.shape_cast %160 : vector<1x8x4xf32> to vector<8x4xf32>
    %162 = vector.extract_strided_slice %139 {offsets = [2, 0, 0], sizes = [1, 8, 4], strides = [1, 1, 1]} : vector<8x8x4xf32> to vector<1x8x4xf32>
    %163 = vector.shape_cast %162 : vector<1x8x4xf32> to vector<8x4xf32>
    %164 = vector.extract_strided_slice %139 {offsets = [3, 0, 0], sizes = [1, 8, 4], strides = [1, 1, 1]} : vector<8x8x4xf32> to vector<1x8x4xf32>
    %165 = vector.shape_cast %164 : vector<1x8x4xf32> to vector<8x4xf32>
    %166 = vector.extract_strided_slice %139 {offsets = [4, 0, 0], sizes = [1, 8, 4], strides = [1, 1, 1]} : vector<8x8x4xf32> to vector<1x8x4xf32>
    %167 = vector.shape_cast %166 : vector<1x8x4xf32> to vector<8x4xf32>
    %168 = vector.extract_strided_slice %139 {offsets = [5, 0, 0], sizes = [1, 8, 4], strides = [1, 1, 1]} : vector<8x8x4xf32> to vector<1x8x4xf32>
    %169 = vector.shape_cast %168 : vector<1x8x4xf32> to vector<8x4xf32>
    %170 = vector.extract_strided_slice %139 {offsets = [6, 0, 0], sizes = [1, 8, 4], strides = [1, 1, 1]} : vector<8x8x4xf32> to vector<1x8x4xf32>
    %171 = vector.shape_cast %170 : vector<1x8x4xf32> to vector<8x4xf32>
    %172 = vector.extract_strided_slice %139 {offsets = [7, 0, 0], sizes = [1, 8, 4], strides = [1, 1, 1]} : vector<8x8x4xf32> to vector<1x8x4xf32>
    %173 = vector.shape_cast %172 : vector<1x8x4xf32> to vector<8x4xf32>
    %174 = tpu.concatenate %159, %161, %163, %165, %167, %169, %171, %173 in 1 : vector<8x4xf32>, vector<8x4xf32>, vector<8x4xf32>, vector<8x4xf32>, vector<8x4xf32>, vector<8x4xf32>, vector<8x4xf32>, vector<8x4xf32> -> vector<8x32xf32>
    %175 = arith.truncf %174 : vector<8x32xf32> to vector<8x32xbf16>
    %cst_44 = arith.constant dense<0.000000e+00> : vector<8x32xf32>
    %176 = tpu.matmul %175, %115, %cst_44 {dimension_numbers = #tpu.dot_dimension_numbers<[1], [0], [0], [1], [0, 0, 1, 1], [], []>} : vector<8x32xbf16>, vector<32x32xbf16>, vector<8x32xf32> -> vector<8x32xf32>
    %177 = vector.broadcast %116 : vector<1x32xf32> to vector<8x32xf32>
    %178 = arith.addf %176, %177 : vector<8x32xf32>
    %c0_45 = arith.constant 0 : index
    %c0_46 = arith.constant 0 : index
    %179 = vector.load %arg16[%c0_45, %c0_46] : memref<8x32xf32, #tpu.memory_space<vmem>>, vector<8x32xf32>
    tpu.vector_store %arg16[%c0_45, %c0_46], %178 {strides = array<i32>} : memref<8x32xf32, #tpu.memory_space<vmem>>, vector<8x32xf32>,
    return
  }
  func.func @transform_0(%arg0: i32) -> (i32, i32) {
    %c0_i32 = arith.constant 0 : i32
    %c0_i32_0 = arith.constant 0 : i32
    return %arg0, %c0_i32 : i32, i32
  }
  func.func @transform_1(%arg0: i32) -> (i32, i32) {
    %c0_i32 = arith.constant 0 : i32
    %c0_i32_0 = arith.constant 0 : i32
    return %arg0, %c0_i32 : i32, i32
  }
  func.func @transform_2(%arg0: i32) -> (i32, i32) {
    %c0_i32 = arith.constant 0 : i32
    %c0_i32_0 = arith.constant 0 : i32
    return %arg0, %c0_i32 : i32, i32
  }
  func.func @transform_3(%arg0: i32) -> (i32, i32) {
    %c0_i32 = arith.constant 0 : i32
    %c0_i32_0 = arith.constant 0 : i32
    return %arg0, %c0_i32 : i32, i32
  }
  func.func @transform_4(%arg0: i32) -> (i32, i32) {
    %c0_i32 = arith.constant 0 : i32
    %c0_i32_0 = arith.constant 0 : i32
    %c0_i32_1 = arith.constant 0 : i32
    return %c0_i32, %c0_i32_0 : i32, i32
  }
  func.func @transform_5(%arg0: i32) -> (i32, i32) {
    %c0_i32 = arith.constant 0 : i32
    %c0_i32_0 = arith.constant 0 : i32
    %c0_i32_1 = arith.constant 0 : i32
    return %c0_i32, %c0_i32_0 : i32, i32
  }
  func.func @transform_6(%arg0: i32) -> (i32, i32) {
    %c0_i32 = arith.constant 0 : i32
    %c0_i32_0 = arith.constant 0 : i32
    %c0_i32_1 = arith.constant 0 : i32
    return %c0_i32, %c0_i32_0 : i32, i32
  }
  func.func @transform_7(%arg0: i32) -> (i32, i32) {
    %c0_i32 = arith.constant 0 : i32
    %c0_i32_0 = arith.constant 0 : i32
    %c0_i32_1 = arith.constant 0 : i32
    return %c0_i32, %c0_i32_0 : i32, i32
  }
  func.func @transform_8(%arg0: i32) -> (i32, i32) {
    %c0_i32 = arith.constant 0 : i32
    %c0_i32_0 = arith.constant 0 : i32
    %c0_i32_1 = arith.constant 0 : i32
    return %c0_i32, %c0_i32_0 : i32, i32
  }
  func.func @transform_9(%arg0: i32) -> (i32, i32) {
    %c0_i32 = arith.constant 0 : i32
    %c0_i32_0 = arith.constant 0 : i32
    %c0_i32_1 = arith.constant 0 : i32
    return %c0_i32, %c0_i32_0 : i32, i32
  }
  func.func @transform_10(%arg0: i32) -> (i32, i32) {
    %c0_i32 = arith.constant 0 : i32
    %c0_i32_0 = arith.constant 0 : i32
    %c0_i32_1 = arith.constant 0 : i32
    return %c0_i32, %c0_i32_0 : i32, i32
  }
  func.func @transform_11(%arg0: i32) -> (i32, i32) {
    %c0_i32 = arith.constant 0 : i32
    %c0_i32_0 = arith.constant 0 : i32
    %c0_i32_1 = arith.constant 0 : i32
    return %c0_i32, %c0_i32_0 : i32, i32
  }
  func.func @transform_12(%arg0: i32) -> (i32, i32) {
    %c0_i32 = arith.constant 0 : i32
    %c0_i32_0 = arith.constant 0 : i32
    %c0_i32_1 = arith.constant 0 : i32
    return %c0_i32, %c0_i32_0 : i32, i32
  }
  func.func @transform_13(%arg0: i32) -> (i32, i32) {
    %c0_i32 = arith.constant 0 : i32
    %c0_i32_0 = arith.constant 0 : i32
    %c0_i32_1 = arith.constant 0 : i32
    return %c0_i32, %c0_i32_0 : i32, i32
  }
  func.func @transform_14(%arg0: i32) -> (i32, i32, i32) {
    %c0_i32 = arith.constant 0 : i32
    %c0_i32_0 = arith.constant 0 : i32
    %c0_i32_1 = arith.constant 0 : i32
    %c0_i32_2 = arith.constant 0 : i32
    return %c0_i32, %c0_i32_0, %c0_i32_1 : i32, i32, i32
  }
  func.func @transform_15(%arg0: i32) -> (i32, i32) {
    %c0_i32 = arith.constant 0 : i32
    %c0_i32_0 = arith.constant 0 : i32
    return %arg0, %c0_i32 : i32, i32
  }
  func.func @transform_16(%arg0: i32) -> (i32, i32) {
    %c0_i32 = arith.constant 0 : i32
    %c0_i32_0 = arith.constant 0 : i32
    return %arg0, %c0_i32 : i32, i32
  }
}

</mosaic_0001>

<llo_original>
// kernel: tpu_custom_call.1
$region0: #{tpu_custom_call.1}
  #allocation0 [shape = 'u32[]', space=smem, size = 0x4, offset = 0x4, fixed_abs, tag = 'smem constant byte address 0x4 - core index']
  #allocation1 [shape = 'u32[144,128]{1,0:T(1,128)}', space=vmem, size = 0x12000, scoped, tag = 'internal scratch']
  %s0 = inlined_call_operand.vmem [shape: f32[16,32], index: 0, kind: input, shape index: {}]
  %s1 = inlined_call_operand.vmem [shape: f32[16,32], index: 1, kind: input, shape index: {}]
  %s2 = inlined_call_operand.vmem [shape: f32[16,32], index: 2, kind: input, shape index: {}]
  %s3 = inlined_call_operand.vmem [shape: f32[16,1], index: 3, kind: input, shape index: {}]
  %s4 = inlined_call_operand.hbm [shape: bf16[32,32], index: 4, kind: input, shape index: {}]
  %s5 = inlined_call_operand.hbm [shape: f32[1,32], index: 5, kind: input, shape index: {}]
  %s6 = inlined_call_operand.vmem [shape: bf16[32,32], index: 6, kind: input, shape index: {}]
  %s7 = inlined_call_operand.hbm [shape: f32[1,32], index: 7, kind: input, shape index: {}]
  %s8 = inlined_call_operand.hbm [shape: bf16[32,32], index: 8, kind: input, shape index: {}]
  %s9 = inlined_call_operand.hbm [shape: f32[1,32], index: 9, kind: input, shape index: {}]
  %s10 = inlined_call_operand.vmem [shape: bf16[32,32], index: 10, kind: input, shape index: {}]
  %s11 = inlined_call_operand.vmem [shape: f32[1,32], index: 11, kind: input, shape index: {}]
  %s12 = inlined_call_operand.vmem [shape: bf16[32,8], index: 12, kind: input, shape index: {}]
  %s13 = inlined_call_operand.vmem [shape: f32[1,8], index: 13, kind: input, shape index: {}]
  %s14 = inlined_call_operand.vmem [shape: f32[8,1,1], index: 14, kind: input, shape index: {}]
  %s15 = inlined_call_operand.hbm [shape: f32[16,32], index: 15, kind: output, shape index: {0}]
  %s16 = inlined_call_operand.hbm [shape: f32[16,64], index: 16, kind: output, shape index: {1}]
  %17 = xla_tuple %s15, %s16
  %s18 = sld [smem:[#allocation0]]
  $region121: #{tpu_custom_call.1} parent=0
    _
  %s20 = ssub.s32 1, %s18
  %s21 = scalar_select 0, %s20, %s18
  $region1: #{tpu_custom_call.1} parent=0
    #allocation2 [shape = 'u8[8192]{0}', space=vmem, size = 0x2000, scoped, tag = 'input window, operand 4, single buffered']
    #allocation3 [shape = 's32[2]{0}', space=sflag, size = 0x8, scoped, tag = 'scoped memory for tpu_custom_call.1']
    #allocation4 [shape = 's32[2]{0}', space=sflag, size = 0x8, scoped, tag = 'scoped memory for tpu_custom_call.1']
    #allocation5 [shape = 'u8[512]{0}', space=vmem, size = 0x400, scoped, tag = 'input window, operand 5, single buffered']
    #allocation6 [shape = 's32[1]{0}', space=sflag, size = 0x4, scoped, tag = 'scoped memory for tpu_custom_call.1']
    #allocation7 [shape = 'u8[512]{0}', space=vmem, size = 0x400, scoped, tag = 'input window, operand 7, single buffered']
    #allocation8 [shape = 'u8[8192]{0}', space=vmem, size = 0x2000, scoped, tag = 'input window, operand 8, single buffered']
    #allocation9 [shape = 's32[1]{0}', space=sflag, size = 0x4, scoped, tag = 'scoped memory for tpu_custom_call.1']
    #allocation10 [shape = 'u8[512]{0}', space=vmem, size = 0x400, scoped, tag = 'input window, operand 9, single buffered']
    #allocation11 [shape = 'u8[8192]{0}', space=vmem, size = 0x2000, scoped, tag = 'output window, operand 0']
    #allocation12 [shape = 'u8[8192]{0}', space=vmem, size = 0x2000, scoped, tag = 'output window, operand 1']
    #allocation13 [shape = 's32[2]{0}', space=sflag, size = 0x8, scoped, tag = 'scoped memory for tpu_custom_call.1']
    %22 = vsyncpa [#allocation3], 0
    %23 = vsyncpa [#allocation6], 0
    %24 = vsyncpa [#allocation9], 0
    %25 = vsyncpa [#allocation4], 0
    %s26 = scalar_lea.sflag [#allocation4], 1
    %27 = vsyncpa %s26, 0
    %28 = vsyncpa [#allocation13], 0
    %s29 = scalar_lea.sflag [#allocation13], 1
    %30 = vsyncpa %s29, 0
    loop: start=0, step=1, limit=4
    $region2: #{tpu_custom_call.1} parent=1 // loop_pre_header
      _
    $region3: #{tpu_custom_call.1} parent=1 // loop_header
      %s32 = sphi 0, %s36
      %p33 = scmp.ge.s32.totalorder %s32, 4
      %s42 = sphi 0, %s44
      %s45 = sphi 0, %s42
      %s46 = sphi 0, %s45
      %s62 = sphi 0, %s46
      %s68 = sphi 0, %s70
      %s71 = sphi 0, %s68
      %s72 = sphi 0, %s71
      %s88 = sphi 0, %s72
      %s94 = sphi 0, %s96
      %s97 = sphi 0, %s94
      %s98 = sphi 0, %s97
      %s114 = sphi 0, %s98
      %s120 = sphi 0, %s122
      %s123 = sphi 0, %s120
      %s124 = sphi 0, %s123
      %s140 = sphi 0, %s124
      %s144 = sphi 0, %s144
      %s146 = sphi 0, %s144
      %s147 = sphi 0, %s146
      %s161 = sphi 0, %s147
      %s165 = sphi 0, %s165
      %s167 = sphi 0, %s165
      %s168 = sphi 0, %s167
      %s182 = sphi 0, %s168
      %s186 = sphi 0, %s186
      %s188 = sphi 0, %s186
      %s189 = sphi 0, %s188
      %s203 = sphi 0, %s189
      %s207 = sphi 0, %s207
      %s209 = sphi 0, %s207
      %s210 = sphi 0, %s209
      %s224 = sphi 0, %s210
      %s228 = sphi 0, %s228
      %s230 = sphi 0, %s228
      %s231 = sphi 0, %s230
      %s245 = sphi 0, %s231
      %s249 = sphi 0, %s249
      %s251 = sphi 0, %s249
      %s252 = sphi 0, %s251
      %s266 = sphi 0, %s252
      %s270 = sphi 0, %s270
      %s272 = sphi 0, %s270
      %s273 = sphi 0, %s272
      %s287 = sphi 0, %s273
      %s291 = sphi 0, %s291
      %s293 = sphi 0, %s291
      %s294 = sphi 0, %s293
      %s308 = sphi 0, %s294
      %s312 = sphi 0, %s312
      %s314 = sphi 0, %s312
      %s315 = sphi 0, %s314
      %s329 = sphi 0, %s315
      %s333 = sphi 0, %s333
      %s335 = sphi 0, %s333
      %s336 = sphi 0, %s335
      %s350 = sphi 0, %s336
      %s354 = sphi 0, %s354
      %s356 = sphi 0, %s354
      %s357 = sphi 0, %s356
      %s371 = sphi 0, %s357
      %s377 = sphi 0, %s379
      %s380 = sphi 0, %s377
      %s381 = sphi 0, %s380
      %s397 = sphi 0, %s381
      %s403 = sphi 0, %s405
      %s406 = sphi 0, %s403
      %s407 = sphi 0, %s406
      %s423 = sphi 0, %s407
    $region4: #{tpu_custom_call.1} parent=1 // loop_header_branch
      %35 = sbr.rel (%p33) target = $region8
    $region5: #{tpu_custom_call.1} parent=1 // loop_body
      %s37 = ssub.s32 %s32, 1
      %s38 = ssub.s32 %s32, 2
      %s39 = sadd.s32 %s32, 1
      %s40 = ssub.s32 %s32, %s39
      %p41 = scmp.eq.s32.totalorder %s40, 0
      %s43 = sadd.s32 %s42, 1
      %s44 = scalar_select %p41, %s42, %s43
      %p47 = pneg %p41
      %p48 = scmp.eq.s32.totalorder %s32, 1
      %p49 = por %p47, %p48
      %p50 = scmp.ne.s32.totalorder %s42, %s45
      %p51 = scmp.eq.s32.totalorder %s32, 0
      %p52 = por %p50, %p51
      %p53 = scmp.ne.s32.totalorder %s42, %s45
      %p54 = scmp.eq.s32.totalorder %s37, 1
      %p55 = por %p53, %p54
      %p56 = scmp.ne.s32.totalorder %s45, %s46
      %p57 = scmp.eq.s32.totalorder %s37, 0
      %p58 = por %p56, %p57
      %p59 = scmp.ne.s32.totalorder %s45, %s46
      %p60 = scmp.eq.s32.totalorder %s38, 1
      %p61 = por %p59, %p60
      %p63 = scmp.ne.s32.totalorder %s46, %s62
      %p64 = scmp.eq.s32.totalorder %s38, 0
      %p65 = por %p63, %p64
      %s66 = ssub.s32 %s32, %s39
      %p67 = scmp.eq.s32.totalorder %s66, 0
      %s69 = sadd.s32 %s68, 1
      %s70 = scalar_select %p67, %s68, %s69
      %p73 = pneg %p67
      %p74 = scmp.eq.s32.totalorder %s32, 1
      %p75 = por %p73, %p74
      %p76 = scmp.ne.s32.totalorder %s68, %s71
      %p77 = scmp.eq.s32.totalorder %s32, 0
      %p78 = por %p76, %p77
      %p79 = scmp.ne.s32.totalorder %s68, %s71
      %p80 = scmp.eq.s32.totalorder %s37, 1
      %p81 = por %p79, %p80
      %p82 = scmp.ne.s32.totalorder %s71, %s72
      %p83 = scmp.eq.s32.totalorder %s37, 0
      %p84 = por %p82, %p83
      %p85 = scmp.ne.s32.totalorder %s71, %s72
      %p86 = scmp.eq.s32.totalorder %s38, 1
      %p87 = por %p85, %p86
      %p89 = scmp.ne.s32.totalorder %s72, %s88
      %p90 = scmp.eq.s32.totalorder %s38, 0
      %p91 = por %p89, %p90
      %s92 = ssub.s32 %s32, %s39
      %p93 = scmp.eq.s32.totalorder %s92, 0
      %s95 = sadd.s32 %s94, 1
      %s96 = scalar_select %p93, %s94, %s95
      %p99 = pneg %p93
      %p100 = scmp.eq.s32.totalorder %s32, 1
      %p101 = por %p99, %p100
      %p102 = scmp.ne.s32.totalorder %s94, %s97
      %p103 = scmp.eq.s32.totalorder %s32, 0
      %p104 = por %p102, %p103
      %p105 = scmp.ne.s32.totalorder %s94, %s97
      %p106 = scmp.eq.s32.totalorder %s37, 1
      %p107 = por %p105, %p106
      %p108 = scmp.ne.s32.totalorder %s97, %s98
      %p109 = scmp.eq.s32.totalorder %s37, 0
      %p110 = por %p108, %p109
      %p111 = scmp.ne.s32.totalorder %s97, %s98
      %p112 = scmp.eq.s32.totalorder %s38, 1
      %p113 = por %p111, %p112
      %p115 = scmp.ne.s32.totalorder %s98, %s114
      %p116 = scmp.eq.s32.totalorder %s38, 0
      %p117 = por %p115, %p116
      %s118 = ssub.s32 %s32, %s39
      %p119 = scmp.eq.s32.totalorder %s118, 0
      %s121 = sadd.s32 %s120, 1
      %s122 = scalar_select %p119, %s120, %s121
      %p125 = pneg %p119
      %p126 = scmp.eq.s32.totalorder %s32, 1
      %p127 = por %p125, %p126
      %p128 = scmp.ne.s32.totalorder %s120, %s123
      %p129 = scmp.eq.s32.totalorder %s32, 0
      %p130 = por %p128, %p129
      %p131 = scmp.ne.s32.totalorder %s120, %s123
      %p132 = scmp.eq.s32.totalorder %s37, 1
      %p133 = por %p131, %p132
      %p134 = scmp.ne.s32.totalorder %s123, %s124
      %p135 = scmp.eq.s32.totalorder %s37, 0
      %p136 = por %p134, %p135
      %p137 = scmp.ne.s32.totalorder %s123, %s124
      %p138 = scmp.eq.s32.totalorder %s38, 1
      %p139 = por %p137, %p138
      %p141 = scmp.ne.s32.totalorder %s124, %s140
      %p142 = scmp.eq.s32.totalorder %s38, 0
      %p143 = por %p141, %p142
      %s145 = sadd.s32 %s144, 1
      %p148 = scmp.eq.s32.totalorder %s32, 1
      %p149 = scmp.ne.s32.totalorder %s144, %s146
      %p150 = scmp.eq.s32.totalorder %s32, 0
      %p151 = por %p149, %p150
      %p152 = scmp.ne.s32.totalorder %s144, %s146
      %p153 = scmp.eq.s32.totalorder %s37, 1
      %p154 = por %p152, %p153
      %p155 = scmp.ne.s32.totalorder %s146, %s147
      %p156 = scmp.eq.s32.totalorder %s37, 0
      %p157 = por %p155, %p156
      %p158 = scmp.ne.s32.totalorder %s146, %s147
      %p159 = scmp.eq.s32.totalorder %s38, 1
      %p160 = por %p158, %p159
      %p162 = scmp.ne.s32.totalorder %s147, %s161
      %p163 = scmp.eq.s32.totalorder %s38, 0
      %p164 = por %p162, %p163
      %s166 = sadd.s32 %s165, 1
      %p169 = scmp.eq.s32.totalorder %s32, 1
      %p170 = scmp.ne.s32.totalorder %s165, %s167
      %p171 = scmp.eq.s32.totalorder %s32, 0
      %p172 = por %p170, %p171
      %p173 = scmp.ne.s32.totalorder %s165, %s167
      %p174 = scmp.eq.s32.totalorder %s37, 1
      %p175 = por %p173, %p174
      %p176 = scmp.ne.s32.totalorder %s167, %s168
      %p177 = scmp.eq.s32.totalorder %s37, 0
      %p178 = por %p176, %p177
      %p179 = scmp.ne.s32.totalorder %s167, %s168
      %p180 = scmp.eq.s32.totalorder %s38, 1
      %p181 = por %p179, %p180
      %p183 = scmp.ne.s32.totalorder %s168, %s182
      %p184 = scmp.eq.s32.totalorder %s38, 0
      %p185 = por %p183, %p184
      %s187 = sadd.s32 %s186, 1
      %p190 = scmp.eq.s32.totalorder %s32, 1
      %p191 = scmp.ne.s32.totalorder %s186, %s188
      %p192 = scmp.eq.s32.totalorder %s32, 0
      %p193 = por %p191, %p192
      %p194 = scmp.ne.s32.totalorder %s186, %s188
      %p195 = scmp.eq.s32.totalorder %s37, 1
      %p196 = por %p194, %p195
      %p197 = scmp.ne.s32.totalorder %s188, %s189
      %p198 = scmp.eq.s32.totalorder %s37, 0
      %p199 = por %p197, %p198
      %p200 = scmp.ne.s32.totalorder %s188, %s189
      %p201 = scmp.eq.s32.totalorder %s38, 1
      %p202 = por %p200, %p201
      %p204 = scmp.ne.s32.totalorder %s189, %s203
      %p205 = scmp.eq.s32.totalorder %s38, 0
      %p206 = por %p204, %p205
      %s208 = sadd.s32 %s207, 1
      %p211 = scmp.eq.s32.totalorder %s32, 1
      %p212 = scmp.ne.s32.totalorder %s207, %s209
      %p213 = scmp.eq.s32.totalorder %s32, 0
      %p214 = por %p212, %p213
      %p215 = scmp.ne.s32.totalorder %s207, %s209
      %p216 = scmp.eq.s32.totalorder %s37, 1
      %p217 = por %p215, %p216
      %p218 = scmp.ne.s32.totalorder %s209, %s210
      %p219 = scmp.eq.s32.totalorder %s37, 0
      %p220 = por %p218, %p219
      %p221 = scmp.ne.s32.totalorder %s209, %s210
      %p222 = scmp.eq.s32.totalorder %s38, 1
      %p223 = por %p221, %p222
      %p225 = scmp.ne.s32.totalorder %s210, %s224
      %p226 = scmp.eq.s32.totalorder %s38, 0
      %p227 = por %p225, %p226
      %s229 = sadd.s32 %s228, 1
      %p232 = scmp.eq.s32.totalorder %s32, 1
      %p233 = scmp.ne.s32.totalorder %s228, %s230
      %p234 = scmp.eq.s32.totalorder %s32, 0
      %p235 = por %p233, %p234
      %p236 = scmp.ne.s32.totalorder %s228, %s230
      %p237 = scmp.eq.s32.totalorder %s37, 1
      %p238 = por %p236, %p237
      %p239 = scmp.ne.s32.totalorder %s230, %s231
      %p240 = scmp.eq.s32.totalorder %s37, 0
      %p241 = por %p239, %p240
      %p242 = scmp.ne.s32.totalorder %s230, %s231
      %p243 = scmp.eq.s32.totalorder %s38, 1
      %p244 = por %p242, %p243
      %p246 = scmp.ne.s32.totalorder %s231, %s245
      %p247 = scmp.eq.s32.totalorder %s38, 0
      %p248 = por %p246, %p247
      %s250 = sadd.s32 %s249, 1
      %p253 = scmp.eq.s32.totalorder %s32, 1
      %p254 = scmp.ne.s32.totalorder %s249, %s251
      %p255 = scmp.eq.s32.totalorder %s32, 0
      %p256 = por %p254, %p255
      %p257 = scmp.ne.s32.totalorder %s249, %s251
      %p258 = scmp.eq.s32.totalorder %s37, 1
      %p259 = por %p257, %p258
      %p260 = scmp.ne.s32.totalorder %s251, %s252
      %p261 = scmp.eq.s32.totalorder %s37, 0
      %p262 = por %p260, %p261
      %p263 = scmp.ne.s32.totalorder %s251, %s252
      %p264 = scmp.eq.s32.totalorder %s38, 1
      %p265 = por %p263, %p264
      %p267 = scmp.ne.s32.totalorder %s252, %s266
      %p268 = scmp.eq.s32.totalorder %s38, 0
      %p269 = por %p267, %p268
      %s271 = sadd.s32 %s270, 1
      %p274 = scmp.eq.s32.totalorder %s32, 1
      %p275 = scmp.ne.s32.totalorder %s270, %s272
      %p276 = scmp.eq.s32.totalorder %s32, 0
      %p277 = por %p275, %p276
      %p278 = scmp.ne.s32.totalorder %s270, %s272
      %p279 = scmp.eq.s32.totalorder %s37, 1
      %p280 = por %p278, %p279
      %p281 = scmp.ne.s32.totalorder %s272, %s273
      %p282 = scmp.eq.s32.totalorder %s37, 0
      %p283 = por %p281, %p282
      %p284 = scmp.ne.s32.totalorder %s272, %s273
      %p285 = scmp.eq.s32.totalorder %s38, 1
      %p286 = por %p284, %p285
      %p288 = scmp.ne.s32.totalorder %s273, %s287
      %p289 = scmp.eq.s32.totalorder %s38, 0
      %p290 = por %p288, %p289
      %s292 = sadd.s32 %s291, 1
      %p295 = scmp.eq.s32.totalorder %s32, 1
      %p296 = scmp.ne.s32.totalorder %s291, %s293
      %p297 = scmp.eq.s32.totalorder %s32, 0
      %p298 = por %p296, %p297
      %p299 = scmp.ne.s32.totalorder %s291, %s293
      %p300 = scmp.eq.s32.totalorder %s37, 1
      %p301 = por %p299, %p300
      %p302 = scmp.ne.s32.totalorder %s293, %s294
      %p303 = scmp.eq.s32.totalorder %s37, 0
      %p304 = por %p302, %p303
      %p305 = scmp.ne.s32.totalorder %s293, %s294
      %p306 = scmp.eq.s32.totalorder %s38, 1
      %p307 = por %p305, %p306
      %p309 = scmp.ne.s32.totalorder %s294, %s308
      %p310 = scmp.eq.s32.totalorder %s38, 0
      %p311 = por %p309, %p310
      %s313 = sadd.s32 %s312, 1
      %p316 = scmp.eq.s32.totalorder %s32, 1
      %p317 = scmp.ne.s32.totalorder %s312, %s314
      %p318 = scmp.eq.s32.totalorder %s32, 0
      %p319 = por %p317, %p318
      %p320 = scmp.ne.s32.totalorder %s312, %s314
      %p321 = scmp.eq.s32.totalorder %s37, 1
      %p322 = por %p320, %p321
      %p323 = scmp.ne.s32.totalorder %s314, %s315
      %p324 = scmp.eq.s32.totalorder %s37, 0
      %p325 = por %p323, %p324
      %p326 = scmp.ne.s32.totalorder %s314, %s315
      %p327 = scmp.eq.s32.totalorder %s38, 1
      %p328 = por %p326, %p327
      %p330 = scmp.ne.s32.totalorder %s315, %s329
      %p331 = scmp.eq.s32.totalorder %s38, 0
      %p332 = por %p330, %p331
      %s334 = sadd.s32 %s333, 1
      %p337 = scmp.eq.s32.totalorder %s32, 1
      %p338 = scmp.ne.s32.totalorder %s333, %s335
      %p339 = scmp.eq.s32.totalorder %s32, 0
      %p340 = por %p338, %p339
      %p341 = scmp.ne.s32.totalorder %s333, %s335
      %p342 = scmp.eq.s32.totalorder %s37, 1
      %p343 = por %p341, %p342
      %p344 = scmp.ne.s32.totalorder %s335, %s336
      %p345 = scmp.eq.s32.totalorder %s37, 0
      %p346 = por %p344, %p345
      %p347 = scmp.ne.s32.totalorder %s335, %s336
      %p348 = scmp.eq.s32.totalorder %s38, 1
      %p349 = por %p347, %p348
      %p351 = scmp.ne.s32.totalorder %s336, %s350
      %p352 = scmp.eq.s32.totalorder %s38, 0
      %p353 = por %p351, %p352
      %s355 = sadd.s32 %s354, 1
      %p358 = scmp.eq.s32.totalorder %s32, 1
      %p359 = scmp.ne.s32.totalorder %s354, %s356
      %p360 = scmp.eq.s32.totalorder %s32, 0
      %p361 = por %p359, %p360
      %p362 = scmp.ne.s32.totalorder %s354, %s356
      %p363 = scmp.eq.s32.totalorder %s37, 1
      %p364 = por %p362, %p363
      %p365 = scmp.ne.s32.totalorder %s356, %s357
      %p366 = scmp.eq.s32.totalorder %s37, 0
      %p367 = por %p365, %p366
      %p368 = scmp.ne.s32.totalorder %s356, %s357
      %p369 = scmp.eq.s32.totalorder %s38, 1
      %p370 = por %p368, %p369
      %p372 = scmp.ne.s32.totalorder %s357, %s371
      %p373 = scmp.eq.s32.totalorder %s38, 0
      %p374 = por %p372, %p373
      %s375 = ssub.s32 %s32, %s39
      %p376 = scmp.eq.s32.totalorder %s375, 0
      %s378 = sadd.s32 %s377, 1
      %s379 = scalar_select %p376, %s377, %s378
      %p382 = pneg %p376
      %p383 = scmp.eq.s32.totalorder %s32, 1
      %p384 = por %p382, %p383
      %p385 = scmp.ne.s32.totalorder %s377, %s380
      %p386 = scmp.eq.s32.totalorder %s32, 0
      %p387 = por %p385, %p386
      %p388 = scmp.ne.s32.totalorder %s377, %s380
      %p389 = scmp.eq.s32.totalorder %s37, 1
      %p390 = por %p388, %p389
      %p391 = scmp.ne.s32.totalorder %s380, %s381
      %p392 = scmp.eq.s32.totalorder %s37, 0
      %p393 = por %p391, %p392
      %p394 = scmp.ne.s32.totalorder %s380, %s381
      %p395 = scmp.eq.s32.totalorder %s38, 1
      %p396 = por %p394, %p395
      %p398 = scmp.ne.s32.totalorder %s381, %s397
      %p399 = scmp.eq.s32.totalorder %s38, 0
      %p400 = por %p398, %p399
      %s401 = ssub.s32 %s32, %s39
      %p402 = scmp.eq.s32.totalorder %s401, 0
      %s404 = sadd.s32 %s403, 1
      %s405 = scalar_select %p402, %s403, %s404
      %p408 = pneg %p402
      %p409 = scmp.eq.s32.totalorder %s32, 1
      %p410 = por %p408, %p409
      %p411 = scmp.ne.s32.totalorder %s403, %s406
      %p412 = scmp.eq.s32.totalorder %s32, 0
      %p413 = por %p411, %p412
      %p414 = scmp.ne.s32.totalorder %s403, %s406
      %p415 = scmp.eq.s32.totalorder %s37, 1
      %p416 = por %p414, %p415
      %p417 = scmp.ne.s32.totalorder %s406, %s407
      %p418 = scmp.eq.s32.totalorder %s37, 0
      %p419 = por %p417, %p418
      %p420 = scmp.ne.s32.totalorder %s406, %s407
      %p421 = scmp.eq.s32.totalorder %s38, 1
      %p422 = por %p420, %p421
      %p424 = scmp.ne.s32.totalorder %s407, %s423
      %p425 = scmp.eq.s32.totalorder %s38, 0
      %p426 = por %p424, %p425
      %p427 = scmp.le.s32.totalorder 1, %s32
      %p428 = scmp.lt.s32.totalorder %s32, 3
      %p429 = pnand %p427, %p428
      %p430 = pneg %p429
      // Predicated region
      $region9: #{tpu_custom_call.1} parent=5 // pred_check
        _
      $region10: #{tpu_custom_call.1} parent=5 // pred_check_branch
        %432 = sbr.rel (%p429) target = $region12
      $region11: #{tpu_custom_call.1} parent=5 // pred_region
        %s433 = ssub.s32 %s32, 1
        // Predicated region
        $region13: #{tpu_custom_call.1} parent=11 // pred_check
          %p434 = pneg %p157
        $region14: #{tpu_custom_call.1} parent=11 // pred_check_branch
          %436 = sbr.rel (%p434) target = $region16
        $region15: #{tpu_custom_call.1} parent=11 // pred_region
          %s438 = ssub.s32 256, 256
          %439 = vsyncadd [#allocation3], %s438
          %s440 = sshll.u32 [#allocation2], 4
          %s441 = int_to_ptr.vmem [resolvable:$true] %s440
          %446 = dma.hbm_to_vmem [thread:$0]  %s4, 256, %s441, [#allocation3], 64, 64, 4
        $region16: #{tpu_custom_call.1} parent=11 // pred_fallthru
          _
        // Predicated region
        $region17: #{tpu_custom_call.1} parent=11 // pred_check
          %p447 = pneg %p178
        $region18: #{tpu_custom_call.1} parent=11 // pred_check_branch
          %449 = sbr.rel (%p447) target = $region20
        $region19: #{tpu_custom_call.1} parent=11 // pred_region
          %s451 = ssub.s32 16, 16
          %452 = vsyncadd [#allocation6], %s451
          %s454 = sshll.u32 [#allocation5], 4
          %s455 = int_to_ptr.vmem [resolvable:$true] %s454
          %457 = dma.hbm_to_vmem [thread:$0]  %s5, 16, %s455, [#allocation6]
        $region20: #{tpu_custom_call.1} parent=11 // pred_fallthru
          _
        // Predicated region
        $region21: #{tpu_custom_call.1} parent=11 // pred_check
          %p458 = pneg %p199
        $region22: #{tpu_custom_call.1} parent=11 // pred_check_branch
          %460 = sbr.rel (%p458) target = $region24
        $region23: #{tpu_custom_call.1} parent=11 // pred_region
          _
        $region24: #{tpu_custom_call.1} parent=11 // pred_fallthru
          _
        // Predicated region
        $region25: #{tpu_custom_call.1} parent=11 // pred_check
          %p461 = pneg %p220
        $region26: #{tpu_custom_call.1} parent=11 // pred_check_branch
          %463 = sbr.rel (%p461) target = $region28
        $region27: #{tpu_custom_call.1} parent=11 // pred_region
          %s465 = ssub.s32 16, 16
          %466 = vsyncadd [#allocation6], %s465
          %s468 = sshll.u32 [#allocation7], 4
          %s469 = int_to_ptr.vmem [resolvable:$true] %s468
          %471 = dma.hbm_to_vmem [thread:$0]  %s7, 16, %s469, [#allocation6]
        $region28: #{tpu_custom_call.1} parent=11 // pred_fallthru
          _
        // Predicated region
        $region29: #{tpu_custom_call.1} parent=11 // pred_check
          %p472 = pneg %p241
        $region30: #{tpu_custom_call.1} parent=11 // pred_check_branch
          %474 = sbr.rel (%p472) target = $region32
        $region31: #{tpu_custom_call.1} parent=11 // pred_region
          %s476 = ssub.s32 256, 256
          %477 = vsyncadd [#allocation9], %s476
          %s478 = sshll.u32 [#allocation8], 4
          %s479 = int_to_ptr.vmem [resolvable:$true] %s478
          %484 = dma.hbm_to_vmem [thread:$0]  %s8, 256, %s479, [#allocation9], 64, 64, 4
        $region32: #{tpu_custom_call.1} parent=11 // pred_fallthru
          _
        // Predicated region
        $region33: #{tpu_custom_call.1} parent=11 // pred_check
          %p485 = pneg %p262
        $region34: #{tpu_custom_call.1} parent=11 // pred_check_branch
          %487 = sbr.rel (%p485) target = $region36
        $region35: #{tpu_custom_call.1} parent=11 // pred_region
          %s489 = ssub.s32 16, 16
          %490 = vsyncadd [#allocation9], %s489
          %s492 = sshll.u32 [#allocation10], 4
          %s493 = int_to_ptr.vmem [resolvable:$true] %s492
          %495 = dma.hbm_to_vmem [thread:$0]  %s9, 16, %s493, [#allocation9]
        $region36: #{tpu_custom_call.1} parent=11 // pred_fallthru
          _
        // Predicated region
        $region37: #{tpu_custom_call.1} parent=11 // pred_check
          %p496 = pneg %p283
        $region38: #{tpu_custom_call.1} parent=11 // pred_check_branch
          %498 = sbr.rel (%p496) target = $region40
        $region39: #{tpu_custom_call.1} parent=11 // pred_region
          _
        $region40: #{tpu_custom_call.1} parent=11 // pred_fallthru
          _
        // Predicated region
        $region41: #{tpu_custom_call.1} parent=11 // pred_check
          %p499 = pneg %p304
        $region42: #{tpu_custom_call.1} parent=11 // pred_check_branch
          %501 = sbr.rel (%p499) target = $region44
        $region43: #{tpu_custom_call.1} parent=11 // pred_region
          _
        $region44: #{tpu_custom_call.1} parent=11 // pred_fallthru
          _
        // Predicated region
        $region45: #{tpu_custom_call.1} parent=11 // pred_check
          %p502 = pneg %p325
        $region46: #{tpu_custom_call.1} parent=11 // pred_check_branch
          %504 = sbr.rel (%p502) target = $region48
        $region47: #{tpu_custom_call.1} parent=11 // pred_region
          _
        $region48: #{tpu_custom_call.1} parent=11 // pred_fallthru
          _
        // Predicated region
        $region49: #{tpu_custom_call.1} parent=11 // pred_check
          %p505 = pneg %p346
        $region50: #{tpu_custom_call.1} parent=11 // pred_check_branch
          %507 = sbr.rel (%p505) target = $region52
        $region51: #{tpu_custom_call.1} parent=11 // pred_region
          _
        $region52: #{tpu_custom_call.1} parent=11 // pred_fallthru
          _
        // Predicated region
        $region53: #{tpu_custom_call.1} parent=11 // pred_check
          %p508 = pneg %p367
        $region54: #{tpu_custom_call.1} parent=11 // pred_check_branch
          %510 = sbr.rel (%p508) target = $region56
        $region55: #{tpu_custom_call.1} parent=11 // pred_region
          _
        $region56: #{tpu_custom_call.1} parent=11 // pred_fallthru
          _
      $region12: #{tpu_custom_call.1} parent=5 // pred_fallthru
        _
      %p511 = scmp.lt.s32.totalorder %s32, 2
      // Predicated region
      $region57: #{tpu_custom_call.1} parent=5 // pred_check
        %p512 = pneg %p511
      $region58: #{tpu_custom_call.1} parent=5 // pred_check_branch
        %514 = sbr.rel (%p512) target = $region60
      $region59: #{tpu_custom_call.1} parent=5 // pred_region
        // Predicated region
        $region61: #{tpu_custom_call.1} parent=59 // pred_check
          %p515 = pneg %p52
        $region62: #{tpu_custom_call.1} parent=59 // pred_check_branch
          %517 = sbr.rel (%p515) target = $region64
        $region63: #{tpu_custom_call.1} parent=59 // pred_region
          %p518 = scmp.lt.s32.totalorder %s32, 1
          %s519 = scalar_select %p518, %s32, 1
          %s520 = smul.addr %s519, 8
          %s521 = scalar_lea.vmem %s0, %s520
        $region64: #{tpu_custom_call.1} parent=59 // pred_fallthru
          _
        // Predicated region
        $region65: #{tpu_custom_call.1} parent=59 // pred_check
          %p522 = pneg %p78
        $region66: #{tpu_custom_call.1} parent=59 // pred_check_branch
          %524 = sbr.rel (%p522) target = $region68
        $region67: #{tpu_custom_call.1} parent=59 // pred_region
          %p525 = scmp.lt.s32.totalorder %s32, 1
          %s526 = scalar_select %p525, %s32, 1
          %s527 = smul.addr %s526, 8
          %s528 = scalar_lea.vmem %s1, %s527
        $region68: #{tpu_custom_call.1} parent=59 // pred_fallthru
          _
        // Predicated region
        $region69: #{tpu_custom_call.1} parent=59 // pred_check
          %p529 = pneg %p104
        $region70: #{tpu_custom_call.1} parent=59 // pred_check_branch
          %531 = sbr.rel (%p529) target = $region72
        $region71: #{tpu_custom_call.1} parent=59 // pred_region
          %p532 = scmp.lt.s32.totalorder %s32, 1
          %s533 = scalar_select %p532, %s32, 1
          %s534 = smul.addr %s533, 8
          %s535 = scalar_lea.vmem %s2, %s534
        $region72: #{tpu_custom_call.1} parent=59 // pred_fallthru
          _
        // Predicated region
        $region73: #{tpu_custom_call.1} parent=59 // pred_check
          %p536 = pneg %p130
        $region74: #{tpu_custom_call.1} parent=59 // pred_check_branch
          %538 = sbr.rel (%p536) target = $region76
        $region75: #{tpu_custom_call.1} parent=59 // pred_region
          %p539 = scmp.lt.s32.totalorder %s32, 1
          %s540 = scalar_select %p539, %s32, 1
          %s541 = smul.addr %s540, 8
          %s542 = scalar_lea.vmem %s3, %s541
        $region76: #{tpu_custom_call.1} parent=59 // pred_fallthru
          _
      $region60: #{tpu_custom_call.1} parent=5 // pred_fallthru
        _
      %p543 = scmp.le.s32.totalorder 1, %s32
      %p544 = scmp.lt.s32.totalorder %s32, 3
      %p545 = pnand %p543, %p544
      %p546 = pneg %p545
      // Predicated region
      $region77: #{tpu_custom_call.1} parent=5 // pred_check
        _
      $region78: #{tpu_custom_call.1} parent=5 // pred_check_branch
        %548 = sbr.rel (%p545) target = $region80
      $region79: #{tpu_custom_call.1} parent=5 // pred_region
        %s549 = ssub.s32 %s32, 1
        // Predicated region
        $region81: #{tpu_custom_call.1} parent=79 // pred_check
          %p550 = pneg %p157
        $region82: #{tpu_custom_call.1} parent=79 // pred_check_branch
          %552 = sbr.rel (%p550) target = $region84
        $region83: #{tpu_custom_call.1} parent=79 // pred_region
          %553 = dma.done [#allocation3], 256
        $region84: #{tpu_custom_call.1} parent=79 // pred_fallthru
          _
        // Predicated region
        $region85: #{tpu_custom_call.1} parent=79 // pred_check
          %p554 = pneg %p178
        $region86: #{tpu_custom_call.1} parent=79 // pred_check_branch
          %556 = sbr.rel (%p554) target = $region88
        $region87: #{tpu_custom_call.1} parent=79 // pred_region
          %557 = dma.done [#allocation6], 16
        $region88: #{tpu_custom_call.1} parent=79 // pred_fallthru
          _
        // Predicated region
        $region89: #{tpu_custom_call.1} parent=79 // pred_check
          %p558 = pneg %p220
        $region90: #{tpu_custom_call.1} parent=79 // pred_check_branch
          %560 = sbr.rel (%p558) target = $region92
        $region91: #{tpu_custom_call.1} parent=79 // pred_region
          %561 = dma.done [#allocation6], 16
        $region92: #{tpu_custom_call.1} parent=79 // pred_fallthru
          _
        // Predicated region
        $region93: #{tpu_custom_call.1} parent=79 // pred_check
          %p562 = pneg %p241
        $region94: #{tpu_custom_call.1} parent=79 // pred_check_branch
          %564 = sbr.rel (%p562) target = $region96
        $region95: #{tpu_custom_call.1} parent=79 // pred_region
          %565 = dma.done [#allocation9], 256
        $region96: #{tpu_custom_call.1} parent=79 // pred_fallthru
          _
        // Predicated region
        $region97: #{tpu_custom_call.1} parent=79 // pred_check
          %p566 = pneg %p262
        $region98: #{tpu_custom_call.1} parent=79 // pred_check_branch
          %568 = sbr.rel (%p566) target = $region100
        $region99: #{tpu_custom_call.1} parent=79 // pred_region
          %569 = dma.done [#allocation9], 16
        $region100: #{tpu_custom_call.1} parent=79 // pred_fallthru
          _
        %p570 = scmp.lt.s32.totalorder %s37, 1
        %s571 = scalar_select %p570, %s37, 1
        %s572 = smul.addr %s571, 8
        %s573 = scalar_lea.vmem %s0, %s572
        %p574 = pneg %p58
        %p575 = pneg %p55
        %p576 = scmp.lt.s32.totalorder %s37, 1
        %s577 = scalar_select %p576, %s37, 1
        %s578 = smul.addr %s577, 8
        %s579 = scalar_lea.vmem %s1, %s578
        %p580 = pneg %p84
        %p581 = pneg %p81
        %p582 = scmp.lt.s32.totalorder %s37, 1
        %s583 = scalar_select %p582, %s37, 1
        %s584 = smul.addr %s583, 8
        %s585 = scalar_lea.vmem %s2, %s584
        %p586 = pneg %p110
        %p587 = pneg %p107
        %p588 = scmp.lt.s32.totalorder %s37, 1
        %s589 = scalar_select %p588, %s37, 1
        %s590 = smul.addr %s589, 8
        %s591 = scalar_lea.vmem %s3, %s590
        %p592 = pneg %p136
        %p593 = pneg %p133
        %p594 = pneg %p157
        %p595 = pneg %p154
        %p596 = pneg %p178
        %p597 = pneg %p175
        %p598 = pneg %p199
        %p599 = pneg %p196
        %p600 = pneg %p220
        %p601 = pneg %p217
        %p602 = pneg %p241
        %p603 = pneg %p238
        %p604 = pneg %p262
        %p605 = pneg %p259
        %p606 = pneg %p283
        %p607 = pneg %p280
        %p608 = pneg %p304
        %p609 = pneg %p301
        %p610 = pneg %p325
        %p611 = pneg %p322
        %p612 = pneg %p346
        %p613 = pneg %p343
        %p614 = pneg %p367
        %p615 = pneg %p364
        %p616 = pneg %p393
        %p617 = pneg %p390
        %s618 = sand.u32 %s380, 1
        %s619 = scalar_lea.sflag [#allocation4], %s618
        %s620 = sand.u32 %s380, 1
        %s621 = smul.addr %s620, 8
        %s622 = scalar_lea.vmem [#allocation11], %s621
        %p623 = pneg %p419
        %p624 = pneg %p416
        %s625 = sand.u32 %s406, 1
        %s626 = scalar_lea.sflag [#allocation13], %s625
        %s627 = sand.u32 %s406, 1
        %s628 = smul.addr %s627, 8
        %s629 = scalar_lea.vmem [#allocation12], %s628
        %p630 = scmp.lt.s32.totalorder %s37, 1
        %s631 = scalar_select %p630, %s37, 1
        %s632 = smul.addr %s631, 8
        %s633 = scalar_lea.vmem %s0, %s632
        %p634 = scmp.lt.s32.totalorder %s37, 1
        %s635 = scalar_select %p634, %s37, 1
        %s636 = smul.addr %s635, 8
        %s637 = scalar_lea.vmem %s1, %s636
        %p638 = scmp.lt.s32.totalorder %s37, 1
        %s639 = scalar_select %p638, %s37, 1
        %s640 = smul.addr %s639, 8
        %s641 = scalar_lea.vmem %s2, %s640
        %p642 = scmp.lt.s32.totalorder %s37, 1
        %s643 = scalar_select %p642, %s37, 1
        %s644 = smul.addr %s643, 8
        %s645 = scalar_lea.vmem %s3, %s644
        %v647 = vld [vmem:[%s633] sm:$0xff]
        %v648 = vpack.c.bf16 %v647, %v647
        %v649 = vld [vmem:[%s637] sm:$0xff]
        %v650 = vpack.c.bf16 %v649, %v649
        %v651 = vld [vmem:[%s641] sm:$0xff]
        %v652 = vpack.c.bf16 %v651, %v651
        %v653 = vld [vmem:[#allocation2] sm:$0xf]
        %v654 = vld [vmem:[#allocation2 + $0x4] sm:$0xf]
        %v655 = vld [vmem:[#allocation2 + $0x8] sm:$0xf]
        %v656 = vld [vmem:[#allocation2 + $0xc] sm:$0xf]
        %v657 = vld [vmem:[#allocation5] sm:$0x1]
        %v659 = vlaneseq
        %v660 = vshrl.u32 %v659, 7
        %v661 = vsub.s32 0, %v660
        %v662 = vrot.slane %v657, %v661
        %v668 = vunpack.c.l.b16 %v653
        %v669 = vunpack.c.l.b16 %v654
        %v670 = vunpack.c.l.b16 %v655
        %v671 = vunpack.c.l.b16 %v656
        %v672 = vpack.c.b16 %v669, %v668
        %v673 = vpack.c.b16 %v671, %v670
        %vm676 = vcmask 261120
        %v678 = vsel %vm676, %v648, 0
        %680 = vmatprep.subr.bf16.mxu0 0
        %681 = vmatpush1.bf16.msra.mxu0 %v672
        %682 = vmatprep.subr.bf16.mxu0 0
        %683 = vmatpush1.bf16.msra.mxu0 %v673
        %684 = vmatprep.subr.bf16.mxu0 0
        %685 = vmatpush1.bf16.msra.mxu0 0
        %686 = vmatprep.subr.bf16.mxu0 0
        %687 = vmatpush1.bf16.msra.mxu0 0
        %688 = vmatprep.subr.bf16.mxu0 0
        %689 = vmatpush1.bf16.msra.mxu0 0
        %690 = vmatprep.subr.bf16.mxu0 0
        %691 = vmatpush1.bf16.msra.mxu0 0
        %692 = vmatprep.subr.bf16.mxu0 0
        %693 = vmatpush1.bf16.msra.mxu0 0
        %694 = vmatprep.subr.bf16.mxu0 0
        %695 = vmatpush1.bf16.msra.mxu0 0
        %696 = vmatprep.subr.bf16.mxu0 0
        %697 = vmatpush1.bf16.msra.mxu0 0
        %698 = vmatprep.subr.bf16.mxu0 0
        %699 = vmatpush1.bf16.msra.mxu0 0
        %700 = vmatprep.subr.bf16.mxu0 0
        %701 = vmatpush1.bf16.msra.mxu0 0
        %702 = vmatprep.subr.bf16.mxu0 0
        %703 = vmatpush1.bf16.msra.mxu0 0
        %704 = vmatprep.subr.bf16.mxu0 0
        %705 = vmatpush1.bf16.msra.mxu0 0
        %706 = vmatprep.subr.bf16.mxu0 0
        %707 = vmatpush1.bf16.msra.mxu0 0
        %708 = vmatprep.subr.bf16.mxu0 0
        %709 = vmatpush1.bf16.msra.mxu0 0
        %710 = vmatprep.subr.bf16.mxu0 0
        %711 = vmatpush1.bf16.msra.mxu0 0
        %712 = vmatprep.mubr.bf16.mxu0 0
        %713 = vmatmul.mubr.bf16.gmra.mrb[0].mxu0 %v678
        %v714 = vpop.f32.mrb[0].mxu0
        %v715 = vadd.f32 %v662, %v714
        %v716 = vpop.f32.mrb[0].mxu0
        %v717 = vpop.f32.mrb[0].mxu0
        %v718 = vpop.f32.mrb[0].mxu0
        %719 = vdwg.mxu0
        %v720 = vmul.f32 %v715, 0.39307567
        %v721 = vld [vmem:[%s6] sm:$0xf]
        %v722 = vld [vmem:[%s6 + $0x4] sm:$0xf]
        %v723 = vld [vmem:[%s6 + $0x8] sm:$0xf]
        %v724 = vld [vmem:[%s6 + $0xc] sm:$0xf]
        %v725 = vld [vmem:[#allocation7] sm:$0x1]
        %v727 = vlaneseq
        %v728 = vshrl.u32 %v727, 7
        %v729 = vsub.s32 0, %v728
        %v730 = vrot.slane %v725, %v729
        %v736 = vunpack.c.l.b16 %v721
        %v737 = vunpack.c.l.b16 %v722
        %v738 = vunpack.c.l.b16 %v723
        %v739 = vunpack.c.l.b16 %v724
        %v740 = vpack.c.b16 %v737, %v736
        %v741 = vpack.c.b16 %v739, %v738
        %v745 = vsel %vm676, %v650, 0
        %747 = vmatprep.subr.bf16.mxu0 0
        %748 = vmatpush1.bf16.msra.mxu0 %v740
        %749 = vmatprep.subr.bf16.mxu0 0
        %750 = vmatpush1.bf16.msra.mxu0 %v741
        %751 = vmatprep.subr.bf16.mxu0 0
        %752 = vmatpush1.bf16.msra.mxu0 0
        %753 = vmatprep.subr.bf16.mxu0 0
        %754 = vmatpush1.bf16.msra.mxu0 0
        %755 = vmatprep.subr.bf16.mxu0 0
        %756 = vmatpush1.bf16.msra.mxu0 0
        %757 = vmatprep.subr.bf16.mxu0 0
        %758 = vmatpush1.bf16.msra.mxu0 0
        %759 = vmatprep.subr.bf16.mxu0 0
        %760 = vmatpush1.bf16.msra.mxu0 0
        %761 = vmatprep.subr.bf16.mxu0 0
        %762 = vmatpush1.bf16.msra.mxu0 0
        %763 = vmatprep.subr.bf16.mxu0 0
        %764 = vmatpush1.bf16.msra.mxu0 0
        %765 = vmatprep.subr.bf16.mxu0 0
        %766 = vmatpush1.bf16.msra.mxu0 0
        %767 = vmatprep.subr.bf16.mxu0 0
        %768 = vmatpush1.bf16.msra.mxu0 0
        %769 = vmatprep.subr.bf16.mxu0 0
        %770 = vmatpush1.bf16.msra.mxu0 0
        %771 = vmatprep.subr.bf16.mxu0 0
        %772 = vmatpush1.bf16.msra.mxu0 0
        %773 = vmatprep.subr.bf16.mxu0 0
        %774 = vmatpush1.bf16.msra.mxu0 0
        %775 = vmatprep.subr.bf16.mxu0 0
        %776 = vmatpush1.bf16.msra.mxu0 0
        %777 = vmatprep.subr.bf16.mxu0 0
        %778 = vmatpush1.bf16.msra.mxu0 0
        %779 = vmatprep.mubr.bf16.mxu0 0
        %780 = vmatmul.mubr.bf16.gmra.mrb[0].mxu0 %v745
        %v781 = vpop.f32.mrb[0].mxu0
        %v782 = vadd.f32 %v730, %v781
        %v783 = vpop.f32.mrb[0].mxu0
        %v784 = vpop.f32.mrb[0].mxu0
        %v785 = vpop.f32.mrb[0].mxu0
        %786 = vdwg.mxu0
        %v787 = vld [vmem:[#allocation8] sm:$0xf]
        %v788 = vld [vmem:[#allocation8 + $0x4] sm:$0xf]
        %v789 = vld [vmem:[#allocation8 + $0x8] sm:$0xf]
        %v790 = vld [vmem:[#allocation8 + $0xc] sm:$0xf]
        %v791 = vld [vmem:[#allocation10] sm:$0x1]
        %v793 = vlaneseq
        %v794 = vshrl.u32 %v793, 7
        %v795 = vsub.s32 0, %v794
        %v796 = vrot.slane %v791, %v795
        %v802 = vunpack.c.l.b16 %v787
        %v803 = vunpack.c.l.b16 %v788
        %v804 = vunpack.c.l.b16 %v789
        %v805 = vunpack.c.l.b16 %v790
        %v806 = vpack.c.b16 %v803, %v802
        %v807 = vpack.c.b16 %v805, %v804
        %v811 = vsel %vm676, %v652, 0
        %813 = vmatprep.subr.bf16.mxu0 0
        %814 = vmatpush1.bf16.msra.mxu0 %v806
        %815 = vmatprep.subr.bf16.mxu0 0
        %816 = vmatpush1.bf16.msra.mxu0 %v807
        %817 = vmatprep.subr.bf16.mxu0 0
        %818 = vmatpush1.bf16.msra.mxu0 0
        %819 = vmatprep.subr.bf16.mxu0 0
        %820 = vmatpush1.bf16.msra.mxu0 0
        %821 = vmatprep.subr.bf16.mxu0 0
        %822 = vmatpush1.bf16.msra.mxu0 0
        %823 = vmatprep.subr.bf16.mxu0 0
        %824 = vmatpush1.bf16.msra.mxu0 0
        %825 = vmatprep.subr.bf16.mxu0 0
        %826 = vmatpush1.bf16.msra.mxu0 0
        %827 = vmatprep.subr.bf16.mxu0 0
        %828 = vmatpush1.bf16.msra.mxu0 0
        %829 = vmatprep.subr.bf16.mxu0 0
        %830 = vmatpush1.bf16.msra.mxu0 0
        %831 = vmatprep.subr.bf16.mxu0 0
        %832 = vmatpush1.bf16.msra.mxu0 0
        %833 = vmatprep.subr.bf16.mxu0 0
        %834 = vmatpush1.bf16.msra.mxu0 0
        %835 = vmatprep.subr.bf16.mxu0 0
        %836 = vmatpush1.bf16.msra.mxu0 0
        %837 = vmatprep.subr.bf16.mxu0 0
        %838 = vmatpush1.bf16.msra.mxu0 0
        %839 = vmatprep.subr.bf16.mxu0 0
        %840 = vmatpush1.bf16.msra.mxu0 0
        %841 = vmatprep.subr.bf16.mxu0 0
        %842 = vmatpush1.bf16.msra.mxu0 0
        %843 = vmatprep.subr.bf16.mxu0 0
        %844 = vmatpush1.bf16.msra.mxu0 0
        %845 = vmatprep.mubr.bf16.mxu0 0
        %846 = vmatmul.mubr.bf16.gmra.mrb[0].mxu0 %v811
        %v847 = vpop.f32.mrb[0].mxu0
        %v848 = vadd.f32 %v796, %v847
        %v849 = vpop.f32.mrb[0].mxu0
        %v850 = vpop.f32.mrb[0].mxu0
        %v851 = vpop.f32.mrb[0].mxu0
        %852 = vdwg.mxu0
        %v853 = vld [vmem:[%s12] sm:$0xf]
        %v854 = vld [vmem:[%s12 + $0x4] sm:$0xf]
        %v855 = vld [vmem:[%s12 + $0x8] sm:$0xf]
        %v856 = vld [vmem:[%s12 + $0xc] sm:$0xf]
        %v857 = vld [vmem:[%s13] sm:$0x1]
        %v859 = vlaneseq
        %v860 = vshrl.u32 %v859, 7
        %v861 = vsub.s32 0, %v860
        %v862 = vrot.slane %v857, %v861
        %v868 = vunpack.c.l.b16 %v853
        %v869 = vunpack.c.l.b16 %v854
        %v870 = vunpack.c.l.b16 %v855
        %v871 = vunpack.c.l.b16 %v856
        %v872 = vpack.c.b16 %v869, %v868
        %v873 = vpack.c.b16 %v871, %v870
        %876 = vmatprep.subr.bf16.mxu0 0
        %877 = vmatpush1.bf16.msra.mxu0 %v872
        %878 = vmatprep.subr.bf16.mxu0 0
        %879 = vmatpush1.bf16.msra.mxu0 %v873
        %880 = vmatprep.subr.bf16.mxu0 0
        %881 = vmatpush1.bf16.msra.mxu0 0
        %882 = vmatprep.subr.bf16.mxu0 0
        %883 = vmatpush1.bf16.msra.mxu0 0
        %884 = vmatprep.subr.bf16.mxu0 0
        %885 = vmatpush1.bf16.msra.mxu0 0
        %886 = vmatprep.subr.bf16.mxu0 0
        %887 = vmatpush1.bf16.msra.mxu0 0
        %888 = vmatprep.subr.bf16.mxu0 0
        %889 = vmatpush1.bf16.msra.mxu0 0
        %890 = vmatprep.subr.bf16.mxu0 0
        %891 = vmatpush1.bf16.msra.mxu0 0
        %892 = vmatprep.subr.bf16.mxu0 0
        %893 = vmatpush1.bf16.msra.mxu0 0
        %894 = vmatprep.subr.bf16.mxu0 0
        %895 = vmatpush1.bf16.msra.mxu0 0
        %896 = vmatprep.subr.bf16.mxu0 0
        %897 = vmatpush1.bf16.msra.mxu0 0
        %898 = vmatprep.subr.bf16.mxu0 0
        %899 = vmatpush1.bf16.msra.mxu0 0
        %900 = vmatprep.subr.bf16.mxu0 0
        %901 = vmatpush1.bf16.msra.mxu0 0
        %902 = vmatprep.subr.bf16.mxu0 0
        %903 = vmatpush1.bf16.msra.mxu0 0
        %904 = vmatprep.subr.bf16.mxu0 0
        %905 = vmatpush1.bf16.msra.mxu0 0
        %906 = vmatprep.subr.bf16.mxu0 0
        %907 = vmatpush1.bf16.msra.mxu0 0
        %908 = vmatprep.mubr.bf16.mxu0 0
        %909 = vmatmul.mubr.bf16.gmra.mrb[0].mxu0 %v678
        %v910 = vpop.f32.mrb[0].mxu0
        %v911 = vadd.f32 %v862, %v910
        %v912 = vpop.f32.mrb[0].mxu0
        %v913 = vpop.f32.mrb[0].mxu0
        %v914 = vpop.f32.mrb[0].mxu0
        %915 = vdwg.mxu0
        %vm916 = vcmask 64512
        %v917 = vsel %vm916, %v911, -inf
        %918 = vmax.xlane.f32.xlu0 %v917
        %v919 = vpop.xlane.xlu0 %918
        %v920 = vsub.f32 %v911, %v919
        %v921 = vmul.f32 %v920, 1.442695
        %v922 = vpow.pop %v921
        %v923 = vsel %vm916, %v922, 0.0
        %924 = vadd.xlane.f32.xlu0 %v923
        %v925 = vpop.xlane.xlu0 %924
        %v926 = vrcp.pop %v925
        %v927 = vmul.f32 %v922, %v926
        %v928 = vld [vmem:[%s645] sm:$0xff]
        %930 = vset.pattern.permute.xlu0 0
        %931 = vperm.xlu0 %930, %v928
        %v932 = vpop.permute.xlu0 %931
        %v934 = vmul.f32 %v932, %v927
        %v935 = vadd.f32 %v934, 1.0
        %937 = vrot.lane.b32.xlu0 %v720, 124
        %v938 = vpop.permute.xlu0 %937
        %940 = vrot.lane.b32.xlu0 %v720, 120
        %v941 = vpop.permute.xlu0 %940
        %943 = vrot.lane.b32.xlu0 %v720, 116
        %v944 = vpop.permute.xlu0 %943
        %946 = vrot.lane.b32.xlu0 %v720, 112
        %v947 = vpop.permute.xlu0 %946
        %949 = vrot.lane.b32.xlu0 %v720, 108
        %v950 = vpop.permute.xlu0 %949
        %952 = vrot.lane.b32.xlu0 %v720, 104
        %v953 = vpop.permute.xlu0 %952
        %955 = vrot.lane.b32.xlu0 %v720, 100
        %v956 = vpop.permute.xlu0 %955
        %v958 = vpack.c.bf16 %v720, %v720
        %v959 = vpack.c.bf16 %v938, %v938
        %v960 = vpack.c.bf16 %v941, %v941
        %v961 = vpack.c.bf16 %v944, %v944
        %v962 = vpack.c.bf16 %v947, %v947
        %v963 = vpack.c.bf16 %v950, %v950
        %v964 = vpack.c.bf16 %v953, %v953
        %v965 = vpack.c.bf16 %v956, %v956
        %967 = vrot.lane.b32.xlu0 %v782, 124
        %v968 = vpop.permute.xlu0 %967
        %970 = vrot.lane.b32.xlu0 %v782, 120
        %v971 = vpop.permute.xlu0 %970
        %973 = vrot.lane.b32.xlu0 %v782, 116
        %v974 = vpop.permute.xlu0 %973
        %976 = vrot.lane.b32.xlu0 %v782, 112
        %v977 = vpop.permute.xlu0 %976
        %979 = vrot.lane.b32.xlu0 %v782, 108
        %v980 = vpop.permute.xlu0 %979
        %982 = vrot.lane.b32.xlu0 %v782, 104
        %v983 = vpop.permute.xlu0 %982
        %985 = vrot.lane.b32.xlu0 %v782, 100
        %v986 = vpop.permute.xlu0 %985
        %v988 = vpack.c.bf16 %v782, %v782
        %v989 = vpack.c.bf16 %v968, %v968
        %v990 = vpack.c.bf16 %v971, %v971
        %v991 = vpack.c.bf16 %v974, %v974
        %v992 = vpack.c.bf16 %v977, %v977
        %v993 = vpack.c.bf16 %v980, %v980
        %v994 = vpack.c.bf16 %v983, %v983
        %v995 = vpack.c.bf16 %v986, %v986
        %997 = vrot.lane.b32.xlu0 %v848, 124
        %v998 = vpop.permute.xlu0 %997
        %1000 = vrot.lane.b32.xlu0 %v848, 120
        %v1001 = vpop.permute.xlu0 %1000
        %1003 = vrot.lane.b32.xlu0 %v848, 116
        %v1004 = vpop.permute.xlu0 %1003
        %1006 = vrot.lane.b32.xlu0 %v848, 112
        %v1007 = vpop.permute.xlu0 %1006
        %1009 = vrot.lane.b32.xlu0 %v848, 108
        %v1010 = vpop.permute.xlu0 %1009
        %1012 = vrot.lane.b32.xlu0 %v848, 104
        %v1013 = vpop.permute.xlu0 %1012
        %1015 = vrot.lane.b32.xlu0 %v848, 100
        %v1016 = vpop.permute.xlu0 %1015
        %v1018 = vpack.c.bf16 %v848, %v848
        %v1019 = vpack.c.bf16 %v998, %v998
        %v1020 = vpack.c.bf16 %v1001, %v1001
        %v1021 = vpack.c.bf16 %v1004, %v1004
        %v1022 = vpack.c.bf16 %v1007, %v1007
        %v1023 = vpack.c.bf16 %v1010, %v1010
        %v1024 = vpack.c.bf16 %v1013, %v1013
        %v1025 = vpack.c.bf16 %v1016, %v1016
        %1027 = vrot.lane.b32.xlu0 %v935, 127
        %v1028 = vpop.permute.xlu0 %1027
        %1029 = vrot.lane.b32.xlu0 %v935, 126
        %v1030 = vpop.permute.xlu0 %1029
        %1031 = vrot.lane.b32.xlu0 %v935, 125
        %v1032 = vpop.permute.xlu0 %1031
        %1033 = vrot.lane.b32.xlu0 %v935, 124
        %v1034 = vpop.permute.xlu0 %1033
        %1035 = vrot.lane.b32.xlu0 %v935, 123
        %v1036 = vpop.permute.xlu0 %1035
        %1037 = vrot.lane.b32.xlu0 %v935, 122
        %v1038 = vpop.permute.xlu0 %1037
        %1039 = vrot.lane.b32.xlu0 %v935, 121
        %v1040 = vpop.permute.xlu0 %1039
        %v1041 = vld [vmem:[%s14] sm:$0x1]
        %v1042 = vld [vmem:[%s14 + $0x1] sm:$0x1]
        %v1043 = vld [vmem:[%s14 + $0x2] sm:$0x1]
        %v1044 = vld [vmem:[%s14 + $0x3] sm:$0x1]
        %v1045 = vld [vmem:[%s14 + $0x4] sm:$0x1]
        %v1046 = vld [vmem:[%s14 + $0x5] sm:$0x1]
        %v1047 = vld [vmem:[%s14 + $0x6] sm:$0x1]
        %v1048 = vld [vmem:[%s14 + $0x7] sm:$0x1]
        %v1049 = vld [vmem:[%s10] sm:$0xf]
        %v1050 = vld [vmem:[%s10 + $0x4] sm:$0xf]
        %v1051 = vld [vmem:[%s10 + $0x8] sm:$0xf]
        %v1052 = vld [vmem:[%s10 + $0xc] sm:$0xf]
        %v1053 = vld [vmem:[%s11] sm:$0x1]
        %v1062 = vlaneseq
        %v1063 = vshrl.u32 %v1062, 7
        %v1064 = vsub.s32 0, %v1063
        %v1065 = vrot.slane %v1041, %v1064
        %v1066 = vlaneseq
        %v1067 = vshrl.u32 %v1066, 7
        %v1068 = vsub.s32 0, %v1067
        %v1069 = vrot.slane %v1042, %v1068
        %v1070 = vlaneseq
        %v1071 = vshrl.u32 %v1070, 7
        %v1072 = vsub.s32 0, %v1071
        %v1073 = vrot.slane %v1043, %v1072
        %v1074 = vlaneseq
        %v1075 = vshrl.u32 %v1074, 7
        %v1076 = vsub.s32 0, %v1075
        %v1077 = vrot.slane %v1044, %v1076
        %v1078 = vlaneseq
        %v1079 = vshrl.u32 %v1078, 7
        %v1080 = vsub.s32 0, %v1079
        %v1081 = vrot.slane %v1045, %v1080
        %v1082 = vlaneseq
        %v1083 = vshrl.u32 %v1082, 7
        %v1084 = vsub.s32 0, %v1083
        %v1085 = vrot.slane %v1046, %v1084
        %v1086 = vlaneseq
        %v1087 = vshrl.u32 %v1086, 7
        %v1088 = vsub.s32 0, %v1087
        %v1089 = vrot.slane %v1047, %v1088
        %v1090 = vlaneseq
        %v1091 = vshrl.u32 %v1090, 7
        %v1092 = vsub.s32 0, %v1091
        %v1093 = vrot.slane %v1048, %v1092
        %1094 = vset.pattern.permute.xlu0 0
        %1095 = vperm.xlu0 %1094, %v1065
        %v1096 = vpop.permute.xlu0 %1095
        %1098 = vset.pattern.permute.xlu0 0
        %1099 = vperm.xlu0 %1098, %v1069
        %v1100 = vpop.permute.xlu0 %1099
        %1102 = vset.pattern.permute.xlu0 0
        %1103 = vperm.xlu0 %1102, %v1073
        %v1104 = vpop.permute.xlu0 %1103
        %1106 = vset.pattern.permute.xlu0 0
        %1107 = vperm.xlu0 %1106, %v1077
        %v1108 = vpop.permute.xlu0 %1107
        %1110 = vset.pattern.permute.xlu0 0
        %1111 = vperm.xlu0 %1110, %v1081
        %v1112 = vpop.permute.xlu0 %1111
        %1114 = vset.pattern.permute.xlu0 0
        %1115 = vperm.xlu0 %1114, %v1085
        %v1116 = vpop.permute.xlu0 %1115
        %1118 = vset.pattern.permute.xlu0 0
        %1119 = vperm.xlu0 %1118, %v1089
        %v1120 = vpop.permute.xlu0 %1119
        %1122 = vset.pattern.permute.xlu0 0
        %1123 = vperm.xlu0 %1122, %v1093
        %v1124 = vpop.permute.xlu0 %1123
        %vm1126 = vcmask 31744
        %v1128 = vsel %vm1126, %v958, 0
        %v1131 = vsel %vm1126, %v988, 0
        %1133 = vmatprep.subr.bf16.mxu0 0
        %1134 = vmatpush1.bf16.xpose.msra.mxu0 %v1131
        %1135 = vmatprep.subr.bf16.mxu0 0
        %1136 = vmatpush1.bf16.xpose.msra.mxu0 0
        %1137 = vmatprep.subr.bf16.mxu0 0
        %1138 = vmatpush1.bf16.xpose.msra.mxu0 0
        %1139 = vmatprep.subr.bf16.mxu0 0
        %1140 = vmatpush1.bf16.xpose.msra.mxu0 0
        %1141 = vmatprep.subr.bf16.mxu0 0
        %1142 = vmatpush1.bf16.xpose.msra.mxu0 0
        %1143 = vmatprep.subr.bf16.mxu0 0
        %1144 = vmatpush1.bf16.xpose.msra.mxu0 0
        %1145 = vmatprep.subr.bf16.mxu0 0
        %1146 = vmatpush1.bf16.xpose.msra.mxu0 0
        %1147 = vmatprep.subr.bf16.mxu0 0
        %1148 = vmatpush1.bf16.xpose.msra.mxu0 0
        %1149 = vmatprep.subr.bf16.mxu0 0
        %1150 = vmatpush1.bf16.xpose.msra.mxu0 0
        %1151 = vmatprep.subr.bf16.mxu0 0
        %1152 = vmatpush1.bf16.xpose.msra.mxu0 0
        %1153 = vmatprep.subr.bf16.mxu0 0
        %1154 = vmatpush1.bf16.xpose.msra.mxu0 0
        %1155 = vmatprep.subr.bf16.mxu0 0
        %1156 = vmatpush1.bf16.xpose.msra.mxu0 0
        %1157 = vmatprep.subr.bf16.mxu0 0
        %1158 = vmatpush1.bf16.xpose.msra.mxu0 0
        %1159 = vmatprep.subr.bf16.mxu0 0
        %1160 = vmatpush1.bf16.xpose.msra.mxu0 0
        %1161 = vmatprep.subr.bf16.mxu0 0
        %1162 = vmatpush1.bf16.xpose.msra.mxu0 0
        %1163 = vmatprep.subr.bf16.mxu0 0
        %1164 = vmatpush1.bf16.xpose.msra.mxu0 0
        %1165 = vmatprep.mubr.bf16.mxu0 0
        %1166 = vmatmul.mubr.bf16.gmra.mrb[0].mxu0 %v1128
        %v1167 = vpop.f32.mrb[0].mxu0
        %v1168 = vadd.f32 %v1096, %v1167
        %v1169 = vpop.f32.mrb[0].mxu0
        %v1170 = vpop.f32.mrb[0].mxu0
        %v1171 = vpop.f32.mrb[0].mxu0
        %1172 = vdwg.mxu0
        %v1174 = vsel %vm1126, %v959, 0
        %v1177 = vsel %vm1126, %v989, 0
        %1179 = vmatprep.subr.bf16.mxu0 0
        %1180 = vmatpush1.bf16.xpose.msra.mxu0 %v1177
        %1181 = vmatprep.subr.bf16.mxu0 0
        %1182 = vmatpush1.bf16.xpose.msra.mxu0 0
        %1183 = vmatprep.subr.bf16.mxu0 0
        %1184 = vmatpush1.bf16.xpose.msra.mxu0 0
        %1185 = vmatprep.subr.bf16.mxu0 0
        %1186 = vmatpush1.bf16.xpose.msra.mxu0 0
        %1187 = vmatprep.subr.bf16.mxu0 0
        %1188 = vmatpush1.bf16.xpose.msra.mxu0 0
        %1189 = vmatprep.subr.bf16.mxu0 0
        %1190 = vmatpush1.bf16.xpose.msra.mxu0 0
        %1191 = vmatprep.subr.bf16.mxu0 0
        %1192 = vmatpush1.bf16.xpose.msra.mxu0 0
        %1193 = vmatprep.subr.bf16.mxu0 0
        %1194 = vmatpush1.bf16.xpose.msra.mxu0 0
        %1195 = vmatprep.subr.bf16.mxu0 0
        %1196 = vmatpush1.bf16.xpose.msra.mxu0 0
        %1197 = vmatprep.subr.bf16.mxu0 0
        %1198 = vmatpush1.bf16.xpose.msra.mxu0 0
        %1199 = vmatprep.subr.bf16.mxu0 0
        %1200 = vmatpush1.bf16.xpose.msra.mxu0 0
        %1201 = vmatprep.subr.bf16.mxu0 0
        %1202 = vmatpush1.bf16.xpose.msra.mxu0 0
        %1203 = vmatprep.subr.bf16.mxu0 0
        %1204 = vmatpush1.bf16.xpose.msra.mxu0 0
        %1205 = vmatprep.subr.bf16.mxu0 0
        %1206 = vmatpush1.bf16.xpose.msra.mxu0 0
        %1207 = vmatprep.subr.bf16.mxu0 0
        %1208 = vmatpush1.bf16.xpose.msra.mxu0 0
        %1209 = vmatprep.subr.bf16.mxu0 0
        %1210 = vmatpush1.bf16.xpose.msra.mxu0 0
        %1211 = vmatprep.mubr.bf16.mxu0 0
        %1212 = vmatmul.mubr.bf16.gmra.mrb[0].mxu0 %v1174
        %v1213 = vpop.f32.mrb[0].mxu0
        %v1214 = vadd.f32 %v1100, %v1213
        %v1215 = vpop.f32.mrb[0].mxu0
        %v1216 = vpop.f32.mrb[0].mxu0
        %v1217 = vpop.f32.mrb[0].mxu0
        %1218 = vdwg.mxu0
        %v1220 = vsel %vm1126, %v960, 0
        %v1223 = vsel %vm1126, %v990, 0
        %1225 = vmatprep.subr.bf16.mxu0 0
        %1226 = vmatpush1.bf16.xpose.msra.mxu0 %v1223
        %1227 = vmatprep.subr.bf16.mxu0 0
        %1228 = vmatpush1.bf16.xpose.msra.mxu0 0
        %1229 = vmatprep.subr.bf16.mxu0 0
        %1230 = vmatpush1.bf16.xpose.msra.mxu0 0
        %1231 = vmatprep.subr.bf16.mxu0 0
        %1232 = vmatpush1.bf16.xpose.msra.mxu0 0
        %1233 = vmatprep.subr.bf16.mxu0 0
        %1234 = vmatpush1.bf16.xpose.msra.mxu0 0
        %1235 = vmatprep.subr.bf16.mxu0 0
        %1236 = vmatpush1.bf16.xpose.msra.mxu0 0
        %1237 = vmatprep.subr.bf16.mxu0 0
        %1238 = vmatpush1.bf16.xpose.msra.mxu0 0
        %1239 = vmatprep.subr.bf16.mxu0 0
        %1240 = vmatpush1.bf16.xpose.msra.mxu0 0
        %1241 = vmatprep.subr.bf16.mxu0 0
        %1242 = vmatpush1.bf16.xpose.msra.mxu0 0
        %1243 = vmatprep.subr.bf16.mxu0 0
        %1244 = vmatpush1.bf16.xpose.msra.mxu0 0
        %1245 = vmatprep.subr.bf16.mxu0 0
        %1246 = vmatpush1.bf16.xpose.msra.mxu0 0
        %1247 = vmatprep.subr.bf16.mxu0 0
        %1248 = vmatpush1.bf16.xpose.msra.mxu0 0
        %1249 = vmatprep.subr.bf16.mxu0 0
        %1250 = vmatpush1.bf16.xpose.msra.mxu0 0
        %1251 = vmatprep.subr.bf16.mxu0 0
        %1252 = vmatpush1.bf16.xpose.msra.mxu0 0
        %1253 = vmatprep.subr.bf16.mxu0 0
        %1254 = vmatpush1.bf16.xpose.msra.mxu0 0
        %1255 = vmatprep.subr.bf16.mxu0 0
        %1256 = vmatpush1.bf16.xpose.msra.mxu0 0
        %1257 = vmatprep.mubr.bf16.mxu0 0
        %1258 = vmatmul.mubr.bf16.gmra.mrb[0].mxu0 %v1220
        %v1259 = vpop.f32.mrb[0].mxu0
        %v1260 = vadd.f32 %v1104, %v1259
        %v1261 = vpop.f32.mrb[0].mxu0
        %v1262 = vpop.f32.mrb[0].mxu0
        %v1263 = vpop.f32.mrb[0].mxu0
        %1264 = vdwg.mxu0
        %v1266 = vsel %vm1126, %v961, 0
        %v1269 = vsel %vm1126, %v991, 0
        %1271 = vmatprep.subr.bf16.mxu0 0
        %1272 = vmatpush1.bf16.xpose.msra.mxu0 %v1269
        %1273 = vmatprep.subr.bf16.mxu0 0
        %1274 = vmatpush1.bf16.xpose.msra.mxu0 0
        %1275 = vmatprep.subr.bf16.mxu0 0
        %1276 = vmatpush1.bf16.xpose.msra.mxu0 0
        %1277 = vmatprep.subr.bf16.mxu0 0
        %1278 = vmatpush1.bf16.xpose.msra.mxu0 0
        %1279 = vmatprep.subr.bf16.mxu0 0
        %1280 = vmatpush1.bf16.xpose.msra.mxu0 0
        %1281 = vmatprep.subr.bf16.mxu0 0
        %1282 = vmatpush1.bf16.xpose.msra.mxu0 0
        %1283 = vmatprep.subr.bf16.mxu0 0
        %1284 = vmatpush1.bf16.xpose.msra.mxu0 0
        %1285 = vmatprep.subr.bf16.mxu0 0
        %1286 = vmatpush1.bf16.xpose.msra.mxu0 0
        %1287 = vmatprep.subr.bf16.mxu0 0
        %1288 = vmatpush1.bf16.xpose.msra.mxu0 0
        %1289 = vmatprep.subr.bf16.mxu0 0
        %1290 = vmatpush1.bf16.xpose.msra.mxu0 0
        %1291 = vmatprep.subr.bf16.mxu0 0
        %1292 = vmatpush1.bf16.xpose.msra.mxu0 0
        %1293 = vmatprep.subr.bf16.mxu0 0
        %1294 = vmatpush1.bf16.xpose.msra.mxu0 0
        %1295 = vmatprep.subr.bf16.mxu0 0
        %1296 = vmatpush1.bf16.xpose.msra.mxu0 0
        %1297 = vmatprep.subr.bf16.mxu0 0
        %1298 = vmatpush1.bf16.xpose.msra.mxu0 0
        %1299 = vmatprep.subr.bf16.mxu0 0
        %1300 = vmatpush1.bf16.xpose.msra.mxu0 0
        %1301 = vmatprep.subr.bf16.mxu0 0
        %1302 = vmatpush1.bf16.xpose.msra.mxu0 0
        %1303 = vmatprep.mubr.bf16.mxu0 0
        %1304 = vmatmul.mubr.bf16.gmra.mrb[0].mxu0 %v1266
        %v1305 = vpop.f32.mrb[0].mxu0
        %v1306 = vadd.f32 %v1108, %v1305
        %v1307 = vpop.f32.mrb[0].mxu0
        %v1308 = vpop.f32.mrb[0].mxu0
        %v1309 = vpop.f32.mrb[0].mxu0
        %1310 = vdwg.mxu0
        %v1312 = vsel %vm1126, %v962, 0
        %v1315 = vsel %vm1126, %v992, 0
        %1317 = vmatprep.subr.bf16.mxu0 0
        %1318 = vmatpush1.bf16.xpose.msra.mxu0 %v1315
        %1319 = vmatprep.subr.bf16.mxu0 0
        %1320 = vmatpush1.bf16.xpose.msra.mxu0 0
        %1321 = vmatprep.subr.bf16.mxu0 0
        %1322 = vmatpush1.bf16.xpose.msra.mxu0 0
        %1323 = vmatprep.subr.bf16.mxu0 0
        %1324 = vmatpush1.bf16.xpose.msra.mxu0 0
        %1325 = vmatprep.subr.bf16.mxu0 0
        %1326 = vmatpush1.bf16.xpose.msra.mxu0 0
        %1327 = vmatprep.subr.bf16.mxu0 0
        %1328 = vmatpush1.bf16.xpose.msra.mxu0 0
        %1329 = vmatprep.subr.bf16.mxu0 0
        %1330 = vmatpush1.bf16.xpose.msra.mxu0 0
        %1331 = vmatprep.subr.bf16.mxu0 0
        %1332 = vmatpush1.bf16.xpose.msra.mxu0 0
        %1333 = vmatprep.subr.bf16.mxu0 0
        %1334 = vmatpush1.bf16.xpose.msra.mxu0 0
        %1335 = vmatprep.subr.bf16.mxu0 0
        %1336 = vmatpush1.bf16.xpose.msra.mxu0 0
        %1337 = vmatprep.subr.bf16.mxu0 0
        %1338 = vmatpush1.bf16.xpose.msra.mxu0 0
        %1339 = vmatprep.subr.bf16.mxu0 0
        %1340 = vmatpush1.bf16.xpose.msra.mxu0 0
        %1341 = vmatprep.subr.bf16.mxu0 0
        %1342 = vmatpush1.bf16.xpose.msra.mxu0 0
        %1343 = vmatprep.subr.bf16.mxu0 0
        %1344 = vmatpush1.bf16.xpose.msra.mxu0 0
        %1345 = vmatprep.subr.bf16.mxu0 0
        %1346 = vmatpush1.bf16.xpose.msra.mxu0 0
        %1347 = vmatprep.subr.bf16.mxu0 0
        %1348 = vmatpush1.bf16.xpose.msra.mxu0 0
        %1349 = vmatprep.mubr.bf16.mxu0 0
        %1350 = vmatmul.mubr.bf16.gmra.mrb[0].mxu0 %v1312
        %v1351 = vpop.f32.mrb[0].mxu0
        %v1352 = vadd.f32 %v1112, %v1351
        %v1353 = vpop.f32.mrb[0].mxu0
        %v1354 = vpop.f32.mrb[0].mxu0
        %v1355 = vpop.f32.mrb[0].mxu0
        %1356 = vdwg.mxu0
        %v1358 = vsel %vm1126, %v963, 0
        %v1361 = vsel %vm1126, %v993, 0
        %1363 = vmatprep.subr.bf16.mxu0 0
        %1364 = vmatpush1.bf16.xpose.msra.mxu0 %v1361
        %1365 = vmatprep.subr.bf16.mxu0 0
        %1366 = vmatpush1.bf16.xpose.msra.mxu0 0
        %1367 = vmatprep.subr.bf16.mxu0 0
        %1368 = vmatpush1.bf16.xpose.msra.mxu0 0
        %1369 = vmatprep.subr.bf16.mxu0 0
        %1370 = vmatpush1.bf16.xpose.msra.mxu0 0
        %1371 = vmatprep.subr.bf16.mxu0 0
        %1372 = vmatpush1.bf16.xpose.msra.mxu0 0
        %1373 = vmatprep.subr.bf16.mxu0 0
        %1374 = vmatpush1.bf16.xpose.msra.mxu0 0
        %1375 = vmatprep.subr.bf16.mxu0 0
        %1376 = vmatpush1.bf16.xpose.msra.mxu0 0
        %1377 = vmatprep.subr.bf16.mxu0 0
        %1378 = vmatpush1.bf16.xpose.msra.mxu0 0
        %1379 = vmatprep.subr.bf16.mxu0 0
        %1380 = vmatpush1.bf16.xpose.msra.mxu0 0
        %1381 = vmatprep.subr.bf16.mxu0 0
        %1382 = vmatpush1.bf16.xpose.msra.mxu0 0
        %1383 = vmatprep.subr.bf16.mxu0 0
        %1384 = vmatpush1.bf16.xpose.msra.mxu0 0
        %1385 = vmatprep.subr.bf16.mxu0 0
        %1386 = vmatpush1.bf16.xpose.msra.mxu0 0
        %1387 = vmatprep.subr.bf16.mxu0 0
        %1388 = vmatpush1.bf16.xpose.msra.mxu0 0
        %1389 = vmatprep.subr.bf16.mxu0 0
        %1390 = vmatpush1.bf16.xpose.msra.mxu0 0
        %1391 = vmatprep.subr.bf16.mxu0 0
        %1392 = vmatpush1.bf16.xpose.msra.mxu0 0
        %1393 = vmatprep.subr.bf16.mxu0 0
        %1394 = vmatpush1.bf16.xpose.msra.mxu0 0
        %1395 = vmatprep.mubr.bf16.mxu0 0
        %1396 = vmatmul.mubr.bf16.gmra.mrb[0].mxu0 %v1358
        %v1397 = vpop.f32.mrb[0].mxu0
        %v1398 = vadd.f32 %v1116, %v1397
        %v1399 = vpop.f32.mrb[0].mxu0
        %v1400 = vpop.f32.mrb[0].mxu0
        %v1401 = vpop.f32.mrb[0].mxu0
        %1402 = vdwg.mxu0
        %v1404 = vsel %vm1126, %v964, 0
        %v1407 = vsel %vm1126, %v994, 0
        %1409 = vmatprep.subr.bf16.mxu0 0
        %1410 = vmatpush1.bf16.xpose.msra.mxu0 %v1407
        %1411 = vmatprep.subr.bf16.mxu0 0
        %1412 = vmatpush1.bf16.xpose.msra.mxu0 0
        %1413 = vmatprep.subr.bf16.mxu0 0
        %1414 = vmatpush1.bf16.xpose.msra.mxu0 0
        %1415 = vmatprep.subr.bf16.mxu0 0
        %1416 = vmatpush1.bf16.xpose.msra.mxu0 0
        %1417 = vmatprep.subr.bf16.mxu0 0
        %1418 = vmatpush1.bf16.xpose.msra.mxu0 0
        %1419 = vmatprep.subr.bf16.mxu0 0
        %1420 = vmatpush1.bf16.xpose.msra.mxu0 0
        %1421 = vmatprep.subr.bf16.mxu0 0
        %1422 = vmatpush1.bf16.xpose.msra.mxu0 0
        %1423 = vmatprep.subr.bf16.mxu0 0
        %1424 = vmatpush1.bf16.xpose.msra.mxu0 0
        %1425 = vmatprep.subr.bf16.mxu0 0
        %1426 = vmatpush1.bf16.xpose.msra.mxu0 0
        %1427 = vmatprep.subr.bf16.mxu0 0
        %1428 = vmatpush1.bf16.xpose.msra.mxu0 0
        %1429 = vmatprep.subr.bf16.mxu0 0
        %1430 = vmatpush1.bf16.xpose.msra.mxu0 0
        %1431 = vmatprep.subr.bf16.mxu0 0
        %1432 = vmatpush1.bf16.xpose.msra.mxu0 0
        %1433 = vmatprep.subr.bf16.mxu0 0
        %1434 = vmatpush1.bf16.xpose.msra.mxu0 0
        %1435 = vmatprep.subr.bf16.mxu0 0
        %1436 = vmatpush1.bf16.xpose.msra.mxu0 0
        %1437 = vmatprep.subr.bf16.mxu0 0
        %1438 = vmatpush1.bf16.xpose.msra.mxu0 0
        %1439 = vmatprep.subr.bf16.mxu0 0
        %1440 = vmatpush1.bf16.xpose.msra.mxu0 0
        %1441 = vmatprep.mubr.bf16.mxu0 0
        %1442 = vmatmul.mubr.bf16.gmra.mrb[0].mxu0 %v1404
        %v1443 = vpop.f32.mrb[0].mxu0
        %v1444 = vadd.f32 %v1120, %v1443
        %v1445 = vpop.f32.mrb[0].mxu0
        %v1446 = vpop.f32.mrb[0].mxu0
        %v1447 = vpop.f32.mrb[0].mxu0
        %1448 = vdwg.mxu0
        %v1450 = vsel %vm1126, %v965, 0
        %v1453 = vsel %vm1126, %v995, 0
        %1455 = vmatprep.subr.bf16.mxu0 0
        %1456 = vmatpush1.bf16.xpose.msra.mxu0 %v1453
        %1457 = vmatprep.subr.bf16.mxu0 0
        %1458 = vmatpush1.bf16.xpose.msra.mxu0 0
        %1459 = vmatprep.subr.bf16.mxu0 0
        %1460 = vmatpush1.bf16.xpose.msra.mxu0 0
        %1461 = vmatprep.subr.bf16.mxu0 0
        %1462 = vmatpush1.bf16.xpose.msra.mxu0 0
        %1463 = vmatprep.subr.bf16.mxu0 0
        %1464 = vmatpush1.bf16.xpose.msra.mxu0 0
        %1465 = vmatprep.subr.bf16.mxu0 0
        %1466 = vmatpush1.bf16.xpose.msra.mxu0 0
        %1467 = vmatprep.subr.bf16.mxu0 0
        %1468 = vmatpush1.bf16.xpose.msra.mxu0 0
        %1469 = vmatprep.subr.bf16.mxu0 0
        %1470 = vmatpush1.bf16.xpose.msra.mxu0 0
        %1471 = vmatprep.subr.bf16.mxu0 0
        %1472 = vmatpush1.bf16.xpose.msra.mxu0 0
        %1473 = vmatprep.subr.bf16.mxu0 0
        %1474 = vmatpush1.bf16.xpose.msra.mxu0 0
        %1475 = vmatprep.subr.bf16.mxu0 0
        %1476 = vmatpush1.bf16.xpose.msra.mxu0 0
        %1477 = vmatprep.subr.bf16.mxu0 0
        %1478 = vmatpush1.bf16.xpose.msra.mxu0 0
        %1479 = vmatprep.subr.bf16.mxu0 0
        %1480 = vmatpush1.bf16.xpose.msra.mxu0 0
        %1481 = vmatprep.subr.bf16.mxu0 0
        %1482 = vmatpush1.bf16.xpose.msra.mxu0 0
        %1483 = vmatprep.subr.bf16.mxu0 0
        %1484 = vmatpush1.bf16.xpose.msra.mxu0 0
        %1485 = vmatprep.subr.bf16.mxu0 0
        %1486 = vmatpush1.bf16.xpose.msra.mxu0 0
        %1487 = vmatprep.mubr.bf16.mxu0 0
        %1488 = vmatmul.mubr.bf16.gmra.mrb[0].mxu0 %v1450
        %v1489 = vpop.f32.mrb[0].mxu0
        %v1490 = vadd.f32 %v1124, %v1489
        %v1491 = vpop.f32.mrb[0].mxu0
        %v1492 = vpop.f32.mrb[0].mxu0
        %v1493 = vpop.f32.mrb[0].mxu0
        %1494 = vdwg.mxu0
        %v1495 = vsel %vm916, %v1168, -inf
        %1496 = vmax.xlane.f32.xlu0 %v1495
        %v1497 = vpop.xlane.xlu0 %1496
        %v1498 = vsel %vm916, %v1214, -inf
        %1499 = vmax.xlane.f32.xlu0 %v1498
        %v1500 = vpop.xlane.xlu0 %1499
        %v1501 = vsel %vm916, %v1260, -inf
        %1502 = vmax.xlane.f32.xlu0 %v1501
        %v1503 = vpop.xlane.xlu0 %1502
        %v1504 = vsel %vm916, %v1306, -inf
        %1505 = vmax.xlane.f32.xlu0 %v1504
        %v1506 = vpop.xlane.xlu0 %1505
        %v1507 = vsel %vm916, %v1352, -inf
        %1508 = vmax.xlane.f32.xlu0 %v1507
        %v1509 = vpop.xlane.xlu0 %1508
        %v1510 = vsel %vm916, %v1398, -inf
        %1511 = vmax.xlane.f32.xlu0 %v1510
        %v1512 = vpop.xlane.xlu0 %1511
        %v1513 = vsel %vm916, %v1444, -inf
        %1514 = vmax.xlane.f32.xlu0 %v1513
        %v1515 = vpop.xlane.xlu0 %1514
        %v1516 = vsel %vm916, %v1490, -inf
        %1517 = vmax.xlane.f32.xlu0 %v1516
        %v1518 = vpop.xlane.xlu0 %1517
        %v1519 = vsub.f32 %v1168, %v1497
        %v1520 = vsub.f32 %v1214, %v1500
        %v1521 = vsub.f32 %v1260, %v1503
        %v1522 = vsub.f32 %v1306, %v1506
        %v1523 = vsub.f32 %v1352, %v1509
        %v1524 = vsub.f32 %v1398, %v1512
        %v1525 = vsub.f32 %v1444, %v1515
        %v1526 = vsub.f32 %v1490, %v1518
        %v1527 = vmul.f32 %v1519, 1.442695
        %v1528 = vpow.pop %v1527
        %v1529 = vmul.f32 %v1520, 1.442695
        %v1530 = vpow.pop %v1529
        %v1531 = vmul.f32 %v1521, 1.442695
        %v1532 = vpow.pop %v1531
        %v1533 = vmul.f32 %v1522, 1.442695
        %v1534 = vpow.pop %v1533
        %v1535 = vmul.f32 %v1523, 1.442695
        %v1536 = vpow.pop %v1535
        %v1537 = vmul.f32 %v1524, 1.442695
        %v1538 = vpow.pop %v1537
        %v1539 = vmul.f32 %v1525, 1.442695
        %v1540 = vpow.pop %v1539
        %v1541 = vmul.f32 %v1526, 1.442695
        %v1542 = vpow.pop %v1541
        %v1543 = vsel %vm916, %v1528, 0.0
        %1544 = vadd.xlane.f32.xlu0 %v1543
        %v1545 = vpop.xlane.xlu0 %1544
        %v1546 = vsel %vm916, %v1530, 0.0
        %1547 = vadd.xlane.f32.xlu0 %v1546
        %v1548 = vpop.xlane.xlu0 %1547
        %v1549 = vsel %vm916, %v1532, 0.0
        %1550 = vadd.xlane.f32.xlu0 %v1549
        %v1551 = vpop.xlane.xlu0 %1550
        %v1552 = vsel %vm916, %v1534, 0.0
        %1553 = vadd.xlane.f32.xlu0 %v1552
        %v1554 = vpop.xlane.xlu0 %1553
        %v1555 = vsel %vm916, %v1536, 0.0
        %1556 = vadd.xlane.f32.xlu0 %v1555
        %v1557 = vpop.xlane.xlu0 %1556
        %v1558 = vsel %vm916, %v1538, 0.0
        %1559 = vadd.xlane.f32.xlu0 %v1558
        %v1560 = vpop.xlane.xlu0 %1559
        %v1561 = vsel %vm916, %v1540, 0.0
        %1562 = vadd.xlane.f32.xlu0 %v1561
        %v1563 = vpop.xlane.xlu0 %1562
        %v1564 = vsel %vm916, %v1542, 0.0
        %1565 = vadd.xlane.f32.xlu0 %v1564
        %v1566 = vpop.xlane.xlu0 %1565
        %v1567 = vrcp.pop %v1545
        %v1568 = vrcp.pop %v1548
        %v1569 = vrcp.pop %v1551
        %v1570 = vrcp.pop %v1554
        %v1571 = vrcp.pop %v1557
        %v1572 = vrcp.pop %v1560
        %v1573 = vrcp.pop %v1563
        %v1574 = vrcp.pop %v1566
        %v1575 = vmul.f32 %v1528, %v1567
        %v1576 = vmul.f32 %v1530, %v1568
        %v1577 = vmul.f32 %v1532, %v1569
        %v1578 = vmul.f32 %v1534, %v1570
        %v1579 = vmul.f32 %v1536, %v1571
        %v1580 = vmul.f32 %v1538, %v1572
        %v1581 = vmul.f32 %v1540, %v1573
        %v1582 = vmul.f32 %v1542, %v1574
        %1583 = vset.pattern.permute.xlu0 0
        %1584 = vperm.xlu0 %1583, %v935
        %v1585 = vpop.permute.xlu0 %1584
        %1587 = vset.pattern.permute.xlu0 0
        %1588 = vperm.xlu0 %1587, %v1028
        %v1589 = vpop.permute.xlu0 %1588
        %1591 = vset.pattern.permute.xlu0 0
        %1592 = vperm.xlu0 %1591, %v1030
        %v1593 = vpop.permute.xlu0 %1592
        %1595 = vset.pattern.permute.xlu0 0
        %1596 = vperm.xlu0 %1595, %v1032
        %v1597 = vpop.permute.xlu0 %1596
        %1599 = vset.pattern.permute.xlu0 0
        %1600 = vperm.xlu0 %1599, %v1034
        %v1601 = vpop.permute.xlu0 %1600
        %1603 = vset.pattern.permute.xlu0 0
        %1604 = vperm.xlu0 %1603, %v1036
        %v1605 = vpop.permute.xlu0 %1604
        %1607 = vset.pattern.permute.xlu0 0
        %1608 = vperm.xlu0 %1607, %v1038
        %v1609 = vpop.permute.xlu0 %1608
        %1611 = vset.pattern.permute.xlu0 0
        %1612 = vperm.xlu0 %1611, %v1040
        %v1613 = vpop.permute.xlu0 %1612
        %v1615 = vmul.f32 %v1575, %v1585
        %v1616 = vmul.f32 %v1576, %v1589
        %v1617 = vmul.f32 %v1577, %v1593
        %v1618 = vmul.f32 %v1578, %v1597
        %v1619 = vmul.f32 %v1579, %v1601
        %v1620 = vmul.f32 %v1580, %v1605
        %v1621 = vmul.f32 %v1581, %v1609
        %v1622 = vmul.f32 %v1582, %v1613
        %v1623 = vmul.f32 %v1615, 1.442695
        %v1624 = vpow.pop %v1623
        %v1625 = vmul.f32 %v1616, 1.442695
        %v1626 = vpow.pop %v1625
        %v1627 = vmul.f32 %v1617, 1.442695
        %v1628 = vpow.pop %v1627
        %v1629 = vmul.f32 %v1618, 1.442695
        %v1630 = vpow.pop %v1629
        %v1631 = vmul.f32 %v1619, 1.442695
        %v1632 = vpow.pop %v1631
        %v1633 = vmul.f32 %v1620, 1.442695
        %v1634 = vpow.pop %v1633
        %v1635 = vmul.f32 %v1621, 1.442695
        %v1636 = vpow.pop %v1635
        %v1637 = vmul.f32 %v1622, 1.442695
        %v1638 = vpow.pop %v1637
        %v1639 = vsel %vm916, %v1624, 0.0
        %1640 = vadd.xlane.f32.xlu0 %v1639
        %v1641 = vpop.xlane.xlu0 %1640
        %v1642 = vsel %vm916, %v1626, 0.0
        %1643 = vadd.xlane.f32.xlu0 %v1642
        %v1644 = vpop.xlane.xlu0 %1643
        %v1645 = vsel %vm916, %v1628, 0.0
        %1646 = vadd.xlane.f32.xlu0 %v1645
        %v1647 = vpop.xlane.xlu0 %1646
        %v1648 = vsel %vm916, %v1630, 0.0
        %1649 = vadd.xlane.f32.xlu0 %v1648
        %v1650 = vpop.xlane.xlu0 %1649
        %v1651 = vsel %vm916, %v1632, 0.0
        %1652 = vadd.xlane.f32.xlu0 %v1651
        %v1653 = vpop.xlane.xlu0 %1652
        %v1654 = vsel %vm916, %v1634, 0.0
        %1655 = vadd.xlane.f32.xlu0 %v1654
        %v1656 = vpop.xlane.xlu0 %1655
        %v1657 = vsel %vm916, %v1636, 0.0
        %1658 = vadd.xlane.f32.xlu0 %v1657
        %v1659 = vpop.xlane.xlu0 %1658
        %v1660 = vsel %vm916, %v1638, 0.0
        %1661 = vadd.xlane.f32.xlu0 %v1660
        %v1662 = vpop.xlane.xlu0 %1661
        %v1663 = vrcp.pop %v1641
        %v1664 = vrcp.pop %v1644
        %v1665 = vrcp.pop %v1647
        %v1666 = vrcp.pop %v1650
        %v1667 = vrcp.pop %v1653
        %v1668 = vrcp.pop %v1656
        %v1669 = vrcp.pop %v1659
        %v1670 = vrcp.pop %v1662
        %v1671 = vmul.f32 %v1624, %v1663
        %v1672 = vmul.f32 %v1626, %v1664
        %v1673 = vmul.f32 %v1628, %v1665
        %v1674 = vmul.f32 %v1630, %v1666
        %v1675 = vmul.f32 %v1632, %v1667
        %v1676 = vmul.f32 %v1634, %v1668
        %v1677 = vmul.f32 %v1636, %v1669
        %v1678 = vmul.f32 %v1638, %v1670
        %v1679 = vpack.c.bf16 %v1671, %v1671
        %v1680 = vpack.c.bf16 %v1672, %v1672
        %v1681 = vpack.c.bf16 %v1673, %v1673
        %v1682 = vpack.c.bf16 %v1674, %v1674
        %v1683 = vpack.c.bf16 %v1675, %v1675
        %v1684 = vpack.c.bf16 %v1676, %v1676
        %v1685 = vpack.c.bf16 %v1677, %v1677
        %v1686 = vpack.c.bf16 %v1678, %v1678
        %v1688 = vsel %vm916, %v1679, 0
        %vm1690 = vcmask 1043456
        %v1692 = vsel %vm1690, %v1018, 0
        %1694 = vmatprep.subr.bf16.mxu0 0
        %1695 = vmatpush1.bf16.msra.mxu0 %v1692
        %1696 = vmatprep.subr.bf16.mxu0 0
        %1697 = vmatpush1.bf16.msra.mxu0 0
        %1698 = vmatprep.subr.bf16.mxu0 0
        %1699 = vmatpush1.bf16.msra.mxu0 0
        %1700 = vmatprep.subr.bf16.mxu0 0
        %1701 = vmatpush1.bf16.msra.mxu0 0
        %1702 = vmatprep.subr.bf16.mxu0 0
        %1703 = vmatpush1.bf16.msra.mxu0 0
        %1704 = vmatprep.subr.bf16.mxu0 0
        %1705 = vmatpush1.bf16.msra.mxu0 0
        %1706 = vmatprep.subr.bf16.mxu0 0
        %1707 = vmatpush1.bf16.msra.mxu0 0
        %1708 = vmatprep.subr.bf16.mxu0 0
        %1709 = vmatpush1.bf16.msra.mxu0 0
        %1710 = vmatprep.subr.bf16.mxu0 0
        %1711 = vmatpush1.bf16.msra.mxu0 0
        %1712 = vmatprep.subr.bf16.mxu0 0
        %1713 = vmatpush1.bf16.msra.mxu0 0
        %1714 = vmatprep.subr.bf16.mxu0 0
        %1715 = vmatpush1.bf16.msra.mxu0 0
        %1716 = vmatprep.subr.bf16.mxu0 0
        %1717 = vmatpush1.bf16.msra.mxu0 0
        %1718 = vmatprep.subr.bf16.mxu0 0
        %1719 = vmatpush1.bf16.msra.mxu0 0
        %1720 = vmatprep.subr.bf16.mxu0 0
        %1721 = vmatpush1.bf16.msra.mxu0 0
        %1722 = vmatprep.subr.bf16.mxu0 0
        %1723 = vmatpush1.bf16.msra.mxu0 0
        %1724 = vmatprep.subr.bf16.mxu0 0
        %1725 = vmatpush1.bf16.msra.mxu0 0
        %1726 = vmatprep.mubr.bf16.mxu0 0
        %1727 = vmatmul.mubr.bf16.gmra.mrb[0].mxu0 %v1688
        %v1728 = vpop.f32.mrb[0].mxu0
        %v1729 = vadd.f32 0.0, %v1728
        %v1730 = vpop.f32.mrb[0].mxu0
        %v1731 = vpop.f32.mrb[0].mxu0
        %v1732 = vpop.f32.mrb[0].mxu0
        %1733 = vdwg.mxu0
        %v1735 = vsel %vm916, %v1680, 0
        %v1738 = vsel %vm1690, %v1019, 0
        %1740 = vmatprep.subr.bf16.mxu0 0
        %1741 = vmatpush1.bf16.msra.mxu0 %v1738
        %1742 = vmatprep.subr.bf16.mxu0 0
        %1743 = vmatpush1.bf16.msra.mxu0 0
        %1744 = vmatprep.subr.bf16.mxu0 0
        %1745 = vmatpush1.bf16.msra.mxu0 0
        %1746 = vmatprep.subr.bf16.mxu0 0
        %1747 = vmatpush1.bf16.msra.mxu0 0
        %1748 = vmatprep.subr.bf16.mxu0 0
        %1749 = vmatpush1.bf16.msra.mxu0 0
        %1750 = vmatprep.subr.bf16.mxu0 0
        %1751 = vmatpush1.bf16.msra.mxu0 0
        %1752 = vmatprep.subr.bf16.mxu0 0
        %1753 = vmatpush1.bf16.msra.mxu0 0
        %1754 = vmatprep.subr.bf16.mxu0 0
        %1755 = vmatpush1.bf16.msra.mxu0 0
        %1756 = vmatprep.subr.bf16.mxu0 0
        %1757 = vmatpush1.bf16.msra.mxu0 0
        %1758 = vmatprep.subr.bf16.mxu0 0
        %1759 = vmatpush1.bf16.msra.mxu0 0
        %1760 = vmatprep.subr.bf16.mxu0 0
        %1761 = vmatpush1.bf16.msra.mxu0 0
        %1762 = vmatprep.subr.bf16.mxu0 0
        %1763 = vmatpush1.bf16.msra.mxu0 0
        %1764 = vmatprep.subr.bf16.mxu0 0
        %1765 = vmatpush1.bf16.msra.mxu0 0
        %1766 = vmatprep.subr.bf16.mxu0 0
        %1767 = vmatpush1.bf16.msra.mxu0 0
        %1768 = vmatprep.subr.bf16.mxu0 0
        %1769 = vmatpush1.bf16.msra.mxu0 0
        %1770 = vmatprep.subr.bf16.mxu0 0
        %1771 = vmatpush1.bf16.msra.mxu0 0
        %1772 = vmatprep.mubr.bf16.mxu0 0
        %1773 = vmatmul.mubr.bf16.gmra.mrb[0].mxu0 %v1735
        %v1774 = vpop.f32.mrb[0].mxu0
        %v1775 = vadd.f32 0.0, %v1774
        %v1776 = vpop.f32.mrb[0].mxu0
        %v1777 = vpop.f32.mrb[0].mxu0
        %v1778 = vpop.f32.mrb[0].mxu0
        %1779 = vdwg.mxu0
        %v1781 = vsel %vm916, %v1681, 0
        %v1784 = vsel %vm1690, %v1020, 0
        %1786 = vmatprep.subr.bf16.mxu0 0
        %1787 = vmatpush1.bf16.msra.mxu0 %v1784
        %1788 = vmatprep.subr.bf16.mxu0 0
        %1789 = vmatpush1.bf16.msra.mxu0 0
        %1790 = vmatprep.subr.bf16.mxu0 0
        %1791 = vmatpush1.bf16.msra.mxu0 0
        %1792 = vmatprep.subr.bf16.mxu0 0
        %1793 = vmatpush1.bf16.msra.mxu0 0
        %1794 = vmatprep.subr.bf16.mxu0 0
        %1795 = vmatpush1.bf16.msra.mxu0 0
        %1796 = vmatprep.subr.bf16.mxu0 0
        %1797 = vmatpush1.bf16.msra.mxu0 0
        %1798 = vmatprep.subr.bf16.mxu0 0
        %1799 = vmatpush1.bf16.msra.mxu0 0
        %1800 = vmatprep.subr.bf16.mxu0 0
        %1801 = vmatpush1.bf16.msra.mxu0 0
        %1802 = vmatprep.subr.bf16.mxu0 0
        %1803 = vmatpush1.bf16.msra.mxu0 0
        %1804 = vmatprep.subr.bf16.mxu0 0
        %1805 = vmatpush1.bf16.msra.mxu0 0
        %1806 = vmatprep.subr.bf16.mxu0 0
        %1807 = vmatpush1.bf16.msra.mxu0 0
        %1808 = vmatprep.subr.bf16.mxu0 0
        %1809 = vmatpush1.bf16.msra.mxu0 0
        %1810 = vmatprep.subr.bf16.mxu0 0
        %1811 = vmatpush1.bf16.msra.mxu0 0
        %1812 = vmatprep.subr.bf16.mxu0 0
        %1813 = vmatpush1.bf16.msra.mxu0 0
        %1814 = vmatprep.subr.bf16.mxu0 0
        %1815 = vmatpush1.bf16.msra.mxu0 0
        %1816 = vmatprep.subr.bf16.mxu0 0
        %1817 = vmatpush1.bf16.msra.mxu0 0
        %1818 = vmatprep.mubr.bf16.mxu0 0
        %1819 = vmatmul.mubr.bf16.gmra.mrb[0].mxu0 %v1781
        %v1820 = vpop.f32.mrb[0].mxu0
        %v1821 = vadd.f32 0.0, %v1820
        %v1822 = vpop.f32.mrb[0].mxu0
        %v1823 = vpop.f32.mrb[0].mxu0
        %v1824 = vpop.f32.mrb[0].mxu0
        %1825 = vdwg.mxu0
        %v1827 = vsel %vm916, %v1682, 0
        %v1830 = vsel %vm1690, %v1021, 0
        %1832 = vmatprep.subr.bf16.mxu0 0
        %1833 = vmatpush1.bf16.msra.mxu0 %v1830
        %1834 = vmatprep.subr.bf16.mxu0 0
        %1835 = vmatpush1.bf16.msra.mxu0 0
        %1836 = vmatprep.subr.bf16.mxu0 0
        %1837 = vmatpush1.bf16.msra.mxu0 0
        %1838 = vmatprep.subr.bf16.mxu0 0
        %1839 = vmatpush1.bf16.msra.mxu0 0
        %1840 = vmatprep.subr.bf16.mxu0 0
        %1841 = vmatpush1.bf16.msra.mxu0 0
        %1842 = vmatprep.subr.bf16.mxu0 0
        %1843 = vmatpush1.bf16.msra.mxu0 0
        %1844 = vmatprep.subr.bf16.mxu0 0
        %1845 = vmatpush1.bf16.msra.mxu0 0
        %1846 = vmatprep.subr.bf16.mxu0 0
        %1847 = vmatpush1.bf16.msra.mxu0 0
        %1848 = vmatprep.subr.bf16.mxu0 0
        %1849 = vmatpush1.bf16.msra.mxu0 0
        %1850 = vmatprep.subr.bf16.mxu0 0
        %1851 = vmatpush1.bf16.msra.mxu0 0
        %1852 = vmatprep.subr.bf16.mxu0 0
        %1853 = vmatpush1.bf16.msra.mxu0 0
        %1854 = vmatprep.subr.bf16.mxu0 0
        %1855 = vmatpush1.bf16.msra.mxu0 0
        %1856 = vmatprep.subr.bf16.mxu0 0
        %1857 = vmatpush1.bf16.msra.mxu0 0
        %1858 = vmatprep.subr.bf16.mxu0 0
        %1859 = vmatpush1.bf16.msra.mxu0 0
        %1860 = vmatprep.subr.bf16.mxu0 0
        %1861 = vmatpush1.bf16.msra.mxu0 0
        %1862 = vmatprep.subr.bf16.mxu0 0
        %1863 = vmatpush1.bf16.msra.mxu0 0
        %1864 = vmatprep.mubr.bf16.mxu0 0
        %1865 = vmatmul.mubr.bf16.gmra.mrb[0].mxu0 %v1827
        %v1866 = vpop.f32.mrb[0].mxu0
        %v1867 = vadd.f32 0.0, %v1866
        %v1868 = vpop.f32.mrb[0].mxu0
        %v1869 = vpop.f32.mrb[0].mxu0
        %v1870 = vpop.f32.mrb[0].mxu0
        %1871 = vdwg.mxu0
        %v1873 = vsel %vm916, %v1683, 0
        %v1876 = vsel %vm1690, %v1022, 0
        %1878 = vmatprep.subr.bf16.mxu0 0
        %1879 = vmatpush1.bf16.msra.mxu0 %v1876
        %1880 = vmatprep.subr.bf16.mxu0 0
        %1881 = vmatpush1.bf16.msra.mxu0 0
        %1882 = vmatprep.subr.bf16.mxu0 0
        %1883 = vmatpush1.bf16.msra.mxu0 0
        %1884 = vmatprep.subr.bf16.mxu0 0
        %1885 = vmatpush1.bf16.msra.mxu0 0
        %1886 = vmatprep.subr.bf16.mxu0 0
        %1887 = vmatpush1.bf16.msra.mxu0 0
        %1888 = vmatprep.subr.bf16.mxu0 0
        %1889 = vmatpush1.bf16.msra.mxu0 0
        %1890 = vmatprep.subr.bf16.mxu0 0
        %1891 = vmatpush1.bf16.msra.mxu0 0
        %1892 = vmatprep.subr.bf16.mxu0 0
        %1893 = vmatpush1.bf16.msra.mxu0 0
        %1894 = vmatprep.subr.bf16.mxu0 0
        %1895 = vmatpush1.bf16.msra.mxu0 0
        %1896 = vmatprep.subr.bf16.mxu0 0
        %1897 = vmatpush1.bf16.msra.mxu0 0
        %1898 = vmatprep.subr.bf16.mxu0 0
        %1899 = vmatpush1.bf16.msra.mxu0 0
        %1900 = vmatprep.subr.bf16.mxu0 0
        %1901 = vmatpush1.bf16.msra.mxu0 0
        %1902 = vmatprep.subr.bf16.mxu0 0
        %1903 = vmatpush1.bf16.msra.mxu0 0
        %1904 = vmatprep.subr.bf16.mxu0 0
        %1905 = vmatpush1.bf16.msra.mxu0 0
        %1906 = vmatprep.subr.bf16.mxu0 0
        %1907 = vmatpush1.bf16.msra.mxu0 0
        %1908 = vmatprep.subr.bf16.mxu0 0
        %1909 = vmatpush1.bf16.msra.mxu0 0
        %1910 = vmatprep.mubr.bf16.mxu0 0
        %1911 = vmatmul.mubr.bf16.gmra.mrb[0].mxu0 %v1873
        %v1912 = vpop.f32.mrb[0].mxu0
        %v1913 = vadd.f32 0.0, %v1912
        %v1914 = vpop.f32.mrb[0].mxu0
        %v1915 = vpop.f32.mrb[0].mxu0
        %v1916 = vpop.f32.mrb[0].mxu0
        %1917 = vdwg.mxu0
        %v1919 = vsel %vm916, %v1684, 0
        %v1922 = vsel %vm1690, %v1023, 0
        %1924 = vmatprep.subr.bf16.mxu0 0
        %1925 = vmatpush1.bf16.msra.mxu0 %v1922
        %1926 = vmatprep.subr.bf16.mxu0 0
        %1927 = vmatpush1.bf16.msra.mxu0 0
        %1928 = vmatprep.subr.bf16.mxu0 0
        %1929 = vmatpush1.bf16.msra.mxu0 0
        %1930 = vmatprep.subr.bf16.mxu0 0
        %1931 = vmatpush1.bf16.msra.mxu0 0
        %1932 = vmatprep.subr.bf16.mxu0 0
        %1933 = vmatpush1.bf16.msra.mxu0 0
        %1934 = vmatprep.subr.bf16.mxu0 0
        %1935 = vmatpush1.bf16.msra.mxu0 0
        %1936 = vmatprep.subr.bf16.mxu0 0
        %1937 = vmatpush1.bf16.msra.mxu0 0
        %1938 = vmatprep.subr.bf16.mxu0 0
        %1939 = vmatpush1.bf16.msra.mxu0 0
        %1940 = vmatprep.subr.bf16.mxu0 0
        %1941 = vmatpush1.bf16.msra.mxu0 0
        %1942 = vmatprep.subr.bf16.mxu0 0
        %1943 = vmatpush1.bf16.msra.mxu0 0
        %1944 = vmatprep.subr.bf16.mxu0 0
        %1945 = vmatpush1.bf16.msra.mxu0 0
        %1946 = vmatprep.subr.bf16.mxu0 0
        %1947 = vmatpush1.bf16.msra.mxu0 0
        %1948 = vmatprep.subr.bf16.mxu0 0
        %1949 = vmatpush1.bf16.msra.mxu0 0
        %1950 = vmatprep.subr.bf16.mxu0 0
        %1951 = vmatpush1.bf16.msra.mxu0 0
        %1952 = vmatprep.subr.bf16.mxu0 0
        %1953 = vmatpush1.bf16.msra.mxu0 0
        %1954 = vmatprep.subr.bf16.mxu0 0
        %1955 = vmatpush1.bf16.msra.mxu0 0
        %1956 = vmatprep.mubr.bf16.mxu0 0
        %1957 = vmatmul.mubr.bf16.gmra.mrb[0].mxu0 %v1919
        %v1958 = vpop.f32.mrb[0].mxu0
        %v1959 = vadd.f32 0.0, %v1958
        %v1960 = vpop.f32.mrb[0].mxu0
        %v1961 = vpop.f32.mrb[0].mxu0
        %v1962 = vpop.f32.mrb[0].mxu0
        %1963 = vdwg.mxu0
        %v1965 = vsel %vm916, %v1685, 0
        %v1968 = vsel %vm1690, %v1024, 0
        %1970 = vmatprep.subr.bf16.mxu0 0
        %1971 = vmatpush1.bf16.msra.mxu0 %v1968
        %1972 = vmatprep.subr.bf16.mxu0 0
        %1973 = vmatpush1.bf16.msra.mxu0 0
        %1974 = vmatprep.subr.bf16.mxu0 0
        %1975 = vmatpush1.bf16.msra.mxu0 0
        %1976 = vmatprep.subr.bf16.mxu0 0
        %1977 = vmatpush1.bf16.msra.mxu0 0
        %1978 = vmatprep.subr.bf16.mxu0 0
        %1979 = vmatpush1.bf16.msra.mxu0 0
        %1980 = vmatprep.subr.bf16.mxu0 0
        %1981 = vmatpush1.bf16.msra.mxu0 0
        %1982 = vmatprep.subr.bf16.mxu0 0
        %1983 = vmatpush1.bf16.msra.mxu0 0
        %1984 = vmatprep.subr.bf16.mxu0 0
        %1985 = vmatpush1.bf16.msra.mxu0 0
        %1986 = vmatprep.subr.bf16.mxu0 0
        %1987 = vmatpush1.bf16.msra.mxu0 0
        %1988 = vmatprep.subr.bf16.mxu0 0
        %1989 = vmatpush1.bf16.msra.mxu0 0
        %1990 = vmatprep.subr.bf16.mxu0 0
        %1991 = vmatpush1.bf16.msra.mxu0 0
        %1992 = vmatprep.subr.bf16.mxu0 0
        %1993 = vmatpush1.bf16.msra.mxu0 0
        %1994 = vmatprep.subr.bf16.mxu0 0
        %1995 = vmatpush1.bf16.msra.mxu0 0
        %1996 = vmatprep.subr.bf16.mxu0 0
        %1997 = vmatpush1.bf16.msra.mxu0 0
        %1998 = vmatprep.subr.bf16.mxu0 0
        %1999 = vmatpush1.bf16.msra.mxu0 0
        %2000 = vmatprep.subr.bf16.mxu0 0
        %2001 = vmatpush1.bf16.msra.mxu0 0
        %2002 = vmatprep.mubr.bf16.mxu0 0
        %2003 = vmatmul.mubr.bf16.gmra.mrb[0].mxu0 %v1965
        %v2004 = vpop.f32.mrb[0].mxu0
        %v2005 = vadd.f32 0.0, %v2004
        %v2006 = vpop.f32.mrb[0].mxu0
        %v2007 = vpop.f32.mrb[0].mxu0
        %v2008 = vpop.f32.mrb[0].mxu0
        %2009 = vdwg.mxu0
        %v2011 = vsel %vm916, %v1686, 0
        %v2014 = vsel %vm1690, %v1025, 0
        %2016 = vmatprep.subr.bf16.mxu0 0
        %2017 = vmatpush1.bf16.msra.mxu0 %v2014
        %2018 = vmatprep.subr.bf16.mxu0 0
        %2019 = vmatpush1.bf16.msra.mxu0 0
        %2020 = vmatprep.subr.bf16.mxu0 0
        %2021 = vmatpush1.bf16.msra.mxu0 0
        %2022 = vmatprep.subr.bf16.mxu0 0
        %2023 = vmatpush1.bf16.msra.mxu0 0
        %2024 = vmatprep.subr.bf16.mxu0 0
        %2025 = vmatpush1.bf16.msra.mxu0 0
        %2026 = vmatprep.subr.bf16.mxu0 0
        %2027 = vmatpush1.bf16.msra.mxu0 0
        %2028 = vmatprep.subr.bf16.mxu0 0
        %2029 = vmatpush1.bf16.msra.mxu0 0
        %2030 = vmatprep.subr.bf16.mxu0 0
        %2031 = vmatpush1.bf16.msra.mxu0 0
        %2032 = vmatprep.subr.bf16.mxu0 0
        %2033 = vmatpush1.bf16.msra.mxu0 0
        %2034 = vmatprep.subr.bf16.mxu0 0
        %2035 = vmatpush1.bf16.msra.mxu0 0
        %2036 = vmatprep.subr.bf16.mxu0 0
        %2037 = vmatpush1.bf16.msra.mxu0 0
        %2038 = vmatprep.subr.bf16.mxu0 0
        %2039 = vmatpush1.bf16.msra.mxu0 0
        %2040 = vmatprep.subr.bf16.mxu0 0
        %2041 = vmatpush1.bf16.msra.mxu0 0
        %2042 = vmatprep.subr.bf16.mxu0 0
        %2043 = vmatpush1.bf16.msra.mxu0 0
        %2044 = vmatprep.subr.bf16.mxu0 0
        %2045 = vmatpush1.bf16.msra.mxu0 0
        %2046 = vmatprep.subr.bf16.mxu0 0
        %2047 = vmatpush1.bf16.msra.mxu0 0
        %2048 = vmatprep.mubr.bf16.mxu0 0
        %2049 = vmatmul.mubr.bf16.gmra.mrb[0].mxu0 %v2011
        %v2050 = vpop.f32.mrb[0].mxu0
        %v2051 = vadd.f32 0.0, %v2050
        %v2052 = vpop.f32.mrb[0].mxu0
        %v2053 = vpop.f32.mrb[0].mxu0
        %v2054 = vpop.f32.mrb[0].mxu0
        %2055 = vdwg.mxu0
        %2057 = vrot.lane.b32.xlu0 %v1672, 8
        %v2058 = vpop.permute.xlu0 %2057
        %2061 = vrot.lane.b32.xlu0 %v1673, 16
        %v2062 = vpop.permute.xlu0 %2061
        %2065 = vrot.lane.b32.xlu0 %v1674, 24
        %v2066 = vpop.permute.xlu0 %2065
        %2069 = vrot.lane.b32.xlu0 %v1675, 32
        %v2070 = vpop.permute.xlu0 %2069
        %2073 = vrot.lane.b32.xlu0 %v1676, 40
        %v2074 = vpop.permute.xlu0 %2073
        %2077 = vrot.lane.b32.xlu0 %v1677, 48
        %v2078 = vpop.permute.xlu0 %2077
        %2081 = vrot.lane.b32.xlu0 %v1678, 56
        %v2082 = vpop.permute.xlu0 %2081
        %v2084 = vsel %vm916, %v1671, %v2058
        %vm2085 = vcmask 130048
        %v2086 = vsel %vm2085, %v2084, %v2062
        %vm2087 = vcmask 195584
        %v2088 = vsel %vm2087, %v2086, %v2066
        %v2089 = vsel %vm676, %v2088, %v2070
        %vm2090 = vcmask 326656
        %v2091 = vsel %vm2090, %v2089, %v2074
        %vm2092 = vcmask 392192
        %v2093 = vsel %vm2092, %v2091, %v2078
        %vm2094 = vcmask 457728
        %v2095 = vsel %vm2094, %v2093, %v2082
        %vm2096 = vcmask 523264
        %2097 = vst.msk [vmem:[%s629] sm:$0xff] %vm2096, %v2095
        %2099 = vrot.lane.b32.xlu0 %v1775, 4
        %v2100 = vpop.permute.xlu0 %2099
        %2103 = vrot.lane.b32.xlu0 %v1821, 8
        %v2104 = vpop.permute.xlu0 %2103
        %2107 = vrot.lane.b32.xlu0 %v1867, 12
        %v2108 = vpop.permute.xlu0 %2107
        %2111 = vrot.lane.b32.xlu0 %v1913, 16
        %v2112 = vpop.permute.xlu0 %2111
        %2115 = vrot.lane.b32.xlu0 %v1959, 20
        %v2116 = vpop.permute.xlu0 %2115
        %2119 = vrot.lane.b32.xlu0 %v2005, 24
        %v2120 = vpop.permute.xlu0 %2119
        %2123 = vrot.lane.b32.xlu0 %v2051, 28
        %v2124 = vpop.permute.xlu0 %2123
        %v2126 = vsel %vm1126, %v1729, %v2100
        %v2127 = vsel %vm916, %v2126, %v2104
        %vm2128 = vcmask 97280
        %v2129 = vsel %vm2128, %v2127, %v2108
        %v2130 = vsel %vm2085, %v2129, %v2112
        %vm2131 = vcmask 162816
        %v2132 = vsel %vm2131, %v2130, %v2116
        %v2133 = vsel %vm2087, %v2132, %v2120
        %vm2134 = vcmask 228352
        %v2135 = vsel %vm2134, %v2133, %v2124
        %v2136 = vpack.c.bf16 %v2135, %v2135
        %v2138 = vlaneseq
        %v2139 = vshrl.u32 %v2138, 7
        %v2140 = vsub.s32 0, %v2139
        %v2141 = vrot.slane %v1053, %v2140
        %v2147 = vunpack.c.l.b16 %v1049
        %v2148 = vunpack.c.l.b16 %v1050
        %v2149 = vunpack.c.l.b16 %v1051
        %v2150 = vunpack.c.l.b16 %v1052
        %v2151 = vpack.c.b16 %v2148, %v2147
        %v2152 = vpack.c.b16 %v2150, %v2149
        %v2156 = vsel %vm676, %v2136, 0
        %2158 = vmatprep.subr.bf16.mxu0 0
        %2159 = vmatpush1.bf16.msra.mxu0 %v2151
        %2160 = vmatprep.subr.bf16.mxu0 0
        %2161 = vmatpush1.bf16.msra.mxu0 %v2152
        %2162 = vmatprep.subr.bf16.mxu0 0
        %2163 = vmatpush1.bf16.msra.mxu0 0
        %2164 = vmatprep.subr.bf16.mxu0 0
        %2165 = vmatpush1.bf16.msra.mxu0 0
        %2166 = vmatprep.subr.bf16.mxu0 0
        %2167 = vmatpush1.bf16.msra.mxu0 0
        %2168 = vmatprep.subr.bf16.mxu0 0
        %2169 = vmatpush1.bf16.msra.mxu0 0
        %2170 = vmatprep.subr.bf16.mxu0 0
        %2171 = vmatpush1.bf16.msra.mxu0 0
        %2172 = vmatprep.subr.bf16.mxu0 0
        %2173 = vmatpush1.bf16.msra.mxu0 0
        %2174 = vmatprep.subr.bf16.mxu0 0
        %2175 = vmatpush1.bf16.msra.mxu0 0
        %2176 = vmatprep.subr.bf16.mxu0 0
        %2177 = vmatpush1.bf16.msra.mxu0 0
        %2178 = vmatprep.subr.bf16.mxu0 0
        %2179 = vmatpush1.bf16.msra.mxu0 0
        %2180 = vmatprep.subr.bf16.mxu0 0
        %2181 = vmatpush1.bf16.msra.mxu0 0
        %2182 = vmatprep.subr.bf16.mxu0 0
        %2183 = vmatpush1.bf16.msra.mxu0 0
        %2184 = vmatprep.subr.bf16.mxu0 0
        %2185 = vmatpush1.bf16.msra.mxu0 0
        %2186 = vmatprep.subr.bf16.mxu0 0
        %2187 = vmatpush1.bf16.msra.mxu0 0
        %2188 = vmatprep.subr.bf16.mxu0 0
        %2189 = vmatpush1.bf16.msra.mxu0 0
        %2190 = vmatprep.mubr.bf16.mxu0 0
        %2191 = vmatmul.mubr.bf16.gmra.mrb[0].mxu0 %v2156
        %v2192 = vpop.f32.mrb[0].mxu0
        %v2193 = vadd.f32 %v2141, %v2192
        %v2194 = vpop.f32.mrb[0].mxu0
        %v2195 = vpop.f32.mrb[0].mxu0
        %v2196 = vpop.f32.mrb[0].mxu0
        %2197 = vdwg.mxu0
        %2198 = vst.msk [vmem:[%s622] sm:$0xff] %vm676, %v2193
        %s2199 = sand.u32 %s380, 1
        %s2200 = scalar_lea.sflag [#allocation4], %s2199
        %s2201 = sand.u32 %s380, 1
        %s2202 = smul.addr %s2201, 8
        %s2203 = scalar_lea.vmem [#allocation11], %s2202
        %s2204 = sand.u32 %s406, 1
        %s2205 = scalar_lea.sflag [#allocation13], %s2204
        %s2206 = sand.u32 %s406, 1
        %s2207 = smul.addr %s2206, 8
        %s2208 = scalar_lea.vmem [#allocation12], %s2207
        // Predicated region
        $region101: #{tpu_custom_call.1} parent=79 // pred_check
          %p2209 = pneg %p390
        $region102: #{tpu_custom_call.1} parent=79 // pred_check_branch
          %2211 = sbr.rel (%p2209) target = $region104
        $region103: #{tpu_custom_call.1} parent=79 // pred_region
          %s2213 = ssub.s32 128, 128
          %2214 = vsyncadd %s2200, %s2213
          %s2215 = smul.addr %s37, 128
          %s2216 = scalar_lea.hbm %s15, %s2215
          %s2218 = sshll.u32 %s2203, 4
          %s2219 = int_to_ptr.vmem [resolvable:$true] %s2218
          %2221 = dma.vmem_to_hbm [thread:$0]  %s2219, 128, %s2216, %s2200
        $region104: #{tpu_custom_call.1} parent=79 // pred_fallthru
          _
        // Predicated region
        $region105: #{tpu_custom_call.1} parent=79 // pred_check
          %p2222 = pneg %p416
        $region106: #{tpu_custom_call.1} parent=79 // pred_check_branch
          %2224 = sbr.rel (%p2222) target = $region108
        $region107: #{tpu_custom_call.1} parent=79 // pred_region
          %s2226 = ssub.s32 128, 128
          %2227 = vsyncadd %s2205, %s2226
          %s2228 = smul.addr %s37, 128
          %s2229 = scalar_lea.hbm %s16, %s2228
          %s2231 = sshll.u32 %s2208, 4
          %s2232 = int_to_ptr.vmem [resolvable:$true] %s2231
          %2234 = dma.vmem_to_hbm [thread:$0]  %s2232, 128, %s2229, %s2205
        $region108: #{tpu_custom_call.1} parent=79 // pred_fallthru
          _
      $region80: #{tpu_custom_call.1} parent=5 // pred_fallthru
        _
      %p2235 = scmp.le.s32.totalorder 2, %s32
      // Predicated region
      $region109: #{tpu_custom_call.1} parent=5 // pred_check
        %p2236 = pneg %p2235
      $region110: #{tpu_custom_call.1} parent=5 // pred_check_branch
        %2238 = sbr.rel (%p2236) target = $region112
      $region111: #{tpu_custom_call.1} parent=5 // pred_region
        %s2239 = ssub.s32 %s32, 2
        // Predicated region
        $region113: #{tpu_custom_call.1} parent=111 // pred_check
          %p2240 = pneg %p396
        $region114: #{tpu_custom_call.1} parent=111 // pred_check_branch
          %2242 = sbr.rel (%p2240) target = $region116
        $region115: #{tpu_custom_call.1} parent=111 // pred_region
          %s2243 = sand.u32 %s381, 1
          %s2244 = scalar_lea.sflag [#allocation4], %s2243
          %s2245 = sand.u32 %s381, 1
          %s2246 = smul.addr %s2245, 8
          %s2247 = scalar_lea.vmem [#allocation11], %s2246
          %2248 = dma.done %s2244, 128
        $region116: #{tpu_custom_call.1} parent=111 // pred_fallthru
          _
        // Predicated region
        $region117: #{tpu_custom_call.1} parent=111 // pred_check
          %p2249 = pneg %p422
        $region118: #{tpu_custom_call.1} parent=111 // pred_check_branch
          %2251 = sbr.rel (%p2249) target = $region120
        $region119: #{tpu_custom_call.1} parent=111 // pred_region
          %s2252 = sand.u32 %s407, 1
          %s2253 = scalar_lea.sflag [#allocation13], %s2252
          %s2254 = sand.u32 %s407, 1
          %s2255 = smul.addr %s2254, 8
          %s2256 = scalar_lea.vmem [#allocation12], %s2255
          %2257 = dma.done %s2253, 128
        $region120: #{tpu_custom_call.1} parent=111 // pred_fallthru
          _
      $region112: #{tpu_custom_call.1} parent=5 // pred_fallthru
        _
    $region6: #{tpu_custom_call.1} parent=1 // loop_footer
      %s36 = sadd.s32 1, %s32
    $region7: #{tpu_custom_call.1} parent=1 // loop_footer_branch
      %31 = sbr.rel target = $region3
    $region8: #{tpu_custom_call.1} parent=1 // loop_exit
      _
    %2258 = vsyncpa [#allocation3], 1
    %s2259 = scalar_lea.sflag [#allocation3], 1
    %2260 = vsyncpa %s2259, 1
    %2261 = vsyncpa [#allocation6], 1
    %2262 = vsyncpa [#allocation9], 1
    %2263 = vsyncpa [#allocation4], 1
    %s2264 = scalar_lea.sflag [#allocation4], 1
    %2265 = vsyncpa %s2264, 1
    %2266 = vsyncpa [#allocation13], 1
    %s2267 = scalar_lea.sflag [#allocation13], 1
    %2268 = vsyncpa %s2267, 1

</llo_original>
